<compile_context>
chip_gen: v7x
topology: tpu7x:2x2x1
jax: 0.10.0
libtpu: 0.0.40
codegen_flags: <defaults>
</compile_context>

<pallas_src>
import jax
import jax.numpy as jnp
from jax.experimental import pallas as pl
from jax.experimental.pallas import tpu as pltpu


NUM_CLASSES = 10
HIDDEN = 128          # every hidden/feature dim is padded to this lane-dense width


def _round_up(n, m):
    return ((n + m - 1) // m) * m


def mlp6_kernel(x_ref,
                w0_ref, b0_ref, w1_ref, b1_ref, w2_ref, b2_ref,
                w3_ref, b3_ref, w4_ref, b4_ref, w5_ref, b5_ref,
                o_ref):
    def linear(h_bf16, w_ref, b_ref):
        acc = jnp.dot(h_bf16, w_ref[...], preferred_element_type=jnp.float32)
        return acc + b_ref[...]

    def sigmoid(z):  # f32 epilogue (exp on EUP, rest on VPU)
        return 1.0 / (1.0 + jnp.exp(-z))

    h = x_ref[...]                                               # bf16 (TM, K0)
    h = sigmoid(linear(h, w0_ref, b0_ref)).astype(jnp.bfloat16)  # fc0 + sigmoid
    h = sigmoid(linear(h, w1_ref, b1_ref)).astype(jnp.bfloat16)  # fc1 + sigmoid
    h = sigmoid(linear(h, w2_ref, b2_ref)).astype(jnp.bfloat16)  # fc2 + sigmoid
    h = sigmoid(linear(h, w3_ref, b3_ref)).astype(jnp.bfloat16)  # fc3 + sigmoid
    h = sigmoid(linear(h, w4_ref, b4_ref)).astype(jnp.bfloat16)  # fc4 + sigmoid
    logits = linear(h, w5_ref, b5_ref)                           # fc5, f32 (TM, 128)

    # Padded class lanes (10..127) carry zero weights/bias -> logits == 0 there.
    # Mask them so they do not contribute to the softmax normalizer.
    lane = jax.lax.broadcasted_iota(jnp.int32, logits.shape, 1)
    logits = jnp.where(lane < NUM_CLASSES, logits, jnp.float32(-1e30))

    m = jnp.max(logits, axis=-1, keepdims=True)
    z = logits - m
    lse = jnp.log(jnp.sum(jnp.exp(z), axis=-1, keepdims=True))
    o_ref[...] = (z - lse).astype(o_ref.dtype)


def model6_forward(x, params, image_size):
    """x: any shape flattening to [B, image_size]. Returns [B, 10] f32 log-probs."""
    (w0, b0), (w1, b1), (w2, b2), (w3, b3), (w4, b4), (w5, b5) = params

    x2d = x.reshape(-1, image_size).astype(jnp.float32)
    B = x2d.shape[0]

    K0 = _round_up(image_size, 128)               # lane-dense input width
    B_pad = max(_round_up(B, 16), 16)             # fill sublanes (bf16 packs 16)
    if B_pad > 256:
        B_pad = _round_up(B_pad, 256)
        tm = 256
    else:
        tm = B_pad                                # single grid step for tiny B

    def pad_w(w, k_in):
        out = jnp.zeros((k_in, HIDDEN), jnp.float32)
        out = out.at[: w.shape[0], : w.shape[1]].set(w)
        return out.astype(jnp.bfloat16)

    def pad_b(b):
        return jnp.zeros((1, HIDDEN), jnp.float32).at[0, : b.shape[0]].set(b)

    wp = [pad_w(w0, K0), pad_w(w1, HIDDEN), pad_w(w2, HIDDEN),
          pad_w(w3, HIDDEN), pad_w(w4, HIDDEN), pad_w(w5, HIDDEN)]
    bp = [pad_b(b) for b in (b0, b1, b2, b3, b4, b5)]

    xp = jnp.zeros((B_pad, K0), jnp.float32).at[:B, :image_size].set(x2d)
    xp = xp.astype(jnp.bfloat16)

    # Batch-tiled x / out; weights and biases VMEM-resident across grid steps.
    in_specs = [pl.BlockSpec((tm, K0), lambda i: (i, 0))]
    args = [xp]
    for w, b in zip(wp, bp):
        in_specs.append(pl.BlockSpec(w.shape, lambda i: (0, 0)))
        in_specs.append(pl.BlockSpec((1, HIDDEN), lambda i: (0, 0)))
        args += [w, b]
    out_spec = pl.BlockSpec((tm, HIDDEN), lambda i: (i, 0))

    out_padded = pl.pallas_call(
        mlp6_kernel,
        out_shape=jax.ShapeDtypeStruct((B_pad, HIDDEN), jnp.float32),
        grid=(B_pad // tm,),
        in_specs=in_specs,
        out_specs=out_spec,
        compiler_params=pltpu.CompilerParams(
            dimension_semantics=("parallel",)),
    )(*args)

    return out_padded[:B, :NUM_CLASSES]


def init_params(key, image_size):
    """PyTorch nn.Linear-style init; weights stored (in, out), biases (out,)."""
    sizes = [(image_size, 128), (128, 64), (64, 10), (10, 10), (10, 10), (10, 10)]
    ks = jax.random.split(key, 2 * len(sizes))
    params = []
    for idx, (fi, fo) in enumerate(sizes):
        bound = 1.0 / (fi ** 0.5)
        w = jax.random.uniform(ks[2 * idx], (fi, fo), jnp.float32, -bound, bound)
        b = jax.random.uniform(ks[2 * idx + 1], (fo,), jnp.float32, -bound, bound)
        params.append((w, b))
    return tuple(params)


def reference_forward(x, params, image_size):
    """Pure-JAX f32 reference of Model6.forward."""
    h = x.reshape(-1, image_size).astype(jnp.float32)
    for i, (w, b) in enumerate(params):
        h = h @ w + b
        if i < len(params) - 1:
            h = jax.nn.sigmoid(h)
    return jax.nn.log_softmax(h, axis=1)


if __name__ == "__main__":
    key = jax.random.PRNGKey(0)
    k_x, k_p = jax.random.split(key)

    B, C, H, W = 2, 1, 28, 28            # MNIST-like: image_size = 784
    image_size = C * H * W
    x = jax.random.normal(k_x, (B, C, H, W), jnp.float32)

    params = init_params(k_p, image_size)

    out = model6_forward(x, params, image_size)
    out = jax.block_until_ready(out)

    assert out.shape == (B, NUM_CLASSES)
    # log-softmax rows must sum (in prob space) to ~1
    row_sums = jnp.sum(jnp.exp(out), axis=1)
    assert bool(jnp.all(jnp.abs(row_sums - 1.0) < 1e-4))
    # match the f32 reference (bf16 matmul inputs -> loose tolerance)
    ref = reference_forward(x, params, image_size)
    assert bool(jnp.all(jnp.abs(out - ref) < 5e-2))

    print("KERNEL_OK")
</pallas_src>

<mosaic_0001>
module attributes {stable_mosaic.version = 11 : i64} {
  func.func @mlp6_kernel(%arg0: i32, %arg1: memref<16x896xbf16, #tpu.memory_space<vmem>>, %arg2: memref<896x128xbf16, #tpu.memory_space<vmem>>, %arg3: memref<1x128xf32, #tpu.memory_space<vmem>>, %arg4: memref<128x128xbf16, #tpu.memory_space<vmem>>, %arg5: memref<1x128xf32, #tpu.memory_space<vmem>>, %arg6: memref<128x128xbf16, #tpu.memory_space<vmem>>, %arg7: memref<1x128xf32, #tpu.memory_space<vmem>>, %arg8: memref<128x128xbf16, #tpu.memory_space<vmem>>, %arg9: memref<1x128xf32, #tpu.memory_space<vmem>>, %arg10: memref<128x128xbf16, #tpu.memory_space<vmem>>, %arg11: memref<1x128xf32, #tpu.memory_space<vmem>>, %arg12: memref<128x128xbf16, #tpu.memory_space<vmem>>, %arg13: memref<1x128xf32, #tpu.memory_space<vmem>>, %arg14: memref<16x128xf32, #tpu.memory_space<vmem>>) attributes {dimension_semantics = [#tpu.dimension_semantics<parallel>], iteration_bounds = array<i64: 1>, scalar_prefetch = 0 : i64, scratch_operands = 0 : i64, tpu.core_type = #tpu.core_type<tc>, window_params = [{transform_indices = @transform_0, window_bounds = array<i64: 16, 896>}, {pipeline_mode = #tpu.pipeline_mode<synchronous>, transform_indices = @transform_1, window_bounds = array<i64: 896, 128>}, {pipeline_mode = #tpu.pipeline_mode<synchronous>, transform_indices = @transform_2, window_bounds = array<i64: 1, 128>}, {pipeline_mode = #tpu.pipeline_mode<synchronous>, transform_indices = @transform_3, window_bounds = array<i64: 128, 128>}, {pipeline_mode = #tpu.pipeline_mode<synchronous>, transform_indices = @transform_4, window_bounds = array<i64: 1, 128>}, {pipeline_mode = #tpu.pipeline_mode<synchronous>, transform_indices = @transform_5, window_bounds = array<i64: 128, 128>}, {pipeline_mode = #tpu.pipeline_mode<synchronous>, transform_indices = @transform_6, window_bounds = array<i64: 1, 128>}, {pipeline_mode = #tpu.pipeline_mode<synchronous>, transform_indices = @transform_7, window_bounds = array<i64: 128, 128>}, {pipeline_mode = #tpu.pipeline_mode<synchronous>, transform_indices = @transform_8, window_bounds = array<i64: 1, 128>}, {pipeline_mode = #tpu.pipeline_mode<synchronous>, transform_indices = @transform_9, window_bounds = array<i64: 128, 128>}, {pipeline_mode = #tpu.pipeline_mode<synchronous>, transform_indices = @transform_10, window_bounds = array<i64: 1, 128>}, {pipeline_mode = #tpu.pipeline_mode<synchronous>, transform_indices = @transform_11, window_bounds = array<i64: 128, 128>}, {pipeline_mode = #tpu.pipeline_mode<synchronous>, transform_indices = @transform_12, window_bounds = array<i64: 1, 128>}, {transform_indices = @transform_13, window_bounds = array<i64: 16, 128>}]} {
    %c0 = arith.constant 0 : index
    %c0_0 = arith.constant 0 : index
    %0 = vector.load %arg1[%c0, %c0_0] : memref<16x896xbf16, #tpu.memory_space<vmem>>, vector<16x896xbf16>
    %c0_1 = arith.constant 0 : index
    %c0_2 = arith.constant 0 : index
    %1 = vector.load %arg2[%c0_1, %c0_2] : memref<896x128xbf16, #tpu.memory_space<vmem>>, vector<896x128xbf16>
    %cst = arith.constant dense<0.000000e+00> : vector<16x128xf32>
    %2 = tpu.matmul %0, %1, %cst {dimension_numbers = #tpu.dot_dimension_numbers<[1], [0], [0], [1], [0, 0, 1, 1], [], []>} : vector<16x896xbf16>, vector<896x128xbf16>, vector<16x128xf32> -> vector<16x128xf32>
    %c0_3 = arith.constant 0 : index
    %c0_4 = arith.constant 0 : index
    %3 = vector.load %arg3[%c0_3, %c0_4] : memref<1x128xf32, #tpu.memory_space<vmem>>, vector<1x128xf32>
    %4 = vector.broadcast %3 : vector<1x128xf32> to vector<16x128xf32>
    %5 = arith.addf %2, %4 : vector<16x128xf32>
    %cst_5 = arith.constant 0.000000e+00 : f32
    %6 = vector.broadcast %cst_5 : f32 to vector<16x128xf32>
    %7 = arith.subf %6, %5 : vector<16x128xf32>
    %8 = math.exp %7 : vector<16x128xf32>
    %cst_6 = arith.constant 1.000000e+00 : f32
    %9 = vector.broadcast %cst_6 : f32 to vector<16x128xf32>
    %10 = arith.addf %9, %8 : vector<16x128xf32>
    %cst_7 = arith.constant 1.000000e+00 : f32
    %11 = vector.broadcast %cst_7 : f32 to vector<16x128xf32>
    %12 = arith.divf %11, %10 : vector<16x128xf32>
    %13 = arith.truncf %12 : vector<16x128xf32> to vector<16x128xbf16>
    %c0_8 = arith.constant 0 : index
    %c0_9 = arith.constant 0 : index
    %14 = vector.load %arg4[%c0_8, %c0_9] : memref<128x128xbf16, #tpu.memory_space<vmem>>, vector<128x128xbf16>
    %cst_10 = arith.constant dense<0.000000e+00> : vector<16x128xf32>
    %15 = tpu.matmul %13, %14, %cst_10 {dimension_numbers = #tpu.dot_dimension_numbers<[1], [0], [0], [1], [0, 0, 1, 1], [], []>} : vector<16x128xbf16>, vector<128x128xbf16>, vector<16x128xf32> -> vector<16x128xf32>
    %c0_11 = arith.constant 0 : index
    %c0_12 = arith.constant 0 : index
    %16 = vector.load %arg5[%c0_11, %c0_12] : memref<1x128xf32, #tpu.memory_space<vmem>>, vector<1x128xf32>
    %17 = vector.broadcast %16 : vector<1x128xf32> to vector<16x128xf32>
    %18 = arith.addf %15, %17 : vector<16x128xf32>
    %cst_13 = arith.constant 0.000000e+00 : f32
    %19 = vector.broadcast %cst_13 : f32 to vector<16x128xf32>
    %20 = arith.subf %19, %18 : vector<16x128xf32>
    %21 = math.exp %20 : vector<16x128xf32>
    %cst_14 = arith.constant 1.000000e+00 : f32
    %22 = vector.broadcast %cst_14 : f32 to vector<16x128xf32>
    %23 = arith.addf %22, %21 : vector<16x128xf32>
    %cst_15 = arith.constant 1.000000e+00 : f32
    %24 = vector.broadcast %cst_15 : f32 to vector<16x128xf32>
    %25 = arith.divf %24, %23 : vector<16x128xf32>
    %26 = arith.truncf %25 : vector<16x128xf32> to vector<16x128xbf16>
    %c0_16 = arith.constant 0 : index
    %c0_17 = arith.constant 0 : index
    %27 = vector.load %arg6[%c0_16, %c0_17] : memref<128x128xbf16, #tpu.memory_space<vmem>>, vector<128x128xbf16>
    %cst_18 = arith.constant dense<0.000000e+00> : vector<16x128xf32>
    %28 = tpu.matmul %26, %27, %cst_18 {dimension_numbers = #tpu.dot_dimension_numbers<[1], [0], [0], [1], [0, 0, 1, 1], [], []>} : vector<16x128xbf16>, vector<128x128xbf16>, vector<16x128xf32> -> vector<16x128xf32>
    %c0_19 = arith.constant 0 : index
    %c0_20 = arith.constant 0 : index
    %29 = vector.load %arg7[%c0_19, %c0_20] : memref<1x128xf32, #tpu.memory_space<vmem>>, vector<1x128xf32>
    %30 = vector.broadcast %29 : vector<1x128xf32> to vector<16x128xf32>
    %31 = arith.addf %28, %30 : vector<16x128xf32>
    %cst_21 = arith.constant 0.000000e+00 : f32
    %32 = vector.broadcast %cst_21 : f32 to vector<16x128xf32>
    %33 = arith.subf %32, %31 : vector<16x128xf32>
    %34 = math.exp %33 : vector<16x128xf32>
    %cst_22 = arith.constant 1.000000e+00 : f32
    %35 = vector.broadcast %cst_22 : f32 to vector<16x128xf32>
    %36 = arith.addf %35, %34 : vector<16x128xf32>
    %cst_23 = arith.constant 1.000000e+00 : f32
    %37 = vector.broadcast %cst_23 : f32 to vector<16x128xf32>
    %38 = arith.divf %37, %36 : vector<16x128xf32>
    %39 = arith.truncf %38 : vector<16x128xf32> to vector<16x128xbf16>
    %c0_24 = arith.constant 0 : index
    %c0_25 = arith.constant 0 : index
    %40 = vector.load %arg8[%c0_24, %c0_25] : memref<128x128xbf16, #tpu.memory_space<vmem>>, vector<128x128xbf16>
    %cst_26 = arith.constant dense<0.000000e+00> : vector<16x128xf32>
    %41 = tpu.matmul %39, %40, %cst_26 {dimension_numbers = #tpu.dot_dimension_numbers<[1], [0], [0], [1], [0, 0, 1, 1], [], []>} : vector<16x128xbf16>, vector<128x128xbf16>, vector<16x128xf32> -> vector<16x128xf32>
    %c0_27 = arith.constant 0 : index
    %c0_28 = arith.constant 0 : index
    %42 = vector.load %arg9[%c0_27, %c0_28] : memref<1x128xf32, #tpu.memory_space<vmem>>, vector<1x128xf32>
    %43 = vector.broadcast %42 : vector<1x128xf32> to vector<16x128xf32>
    %44 = arith.addf %41, %43 : vector<16x128xf32>
    %cst_29 = arith.constant 0.000000e+00 : f32
    %45 = vector.broadcast %cst_29 : f32 to vector<16x128xf32>
    %46 = arith.subf %45, %44 : vector<16x128xf32>
    %47 = math.exp %46 : vector<16x128xf32>
    %cst_30 = arith.constant 1.000000e+00 : f32
    %48 = vector.broadcast %cst_30 : f32 to vector<16x128xf32>
    %49 = arith.addf %48, %47 : vector<16x128xf32>
    %cst_31 = arith.constant 1.000000e+00 : f32
    %50 = vector.broadcast %cst_31 : f32 to vector<16x128xf32>
    %51 = arith.divf %50, %49 : vector<16x128xf32>
    %52 = arith.truncf %51 : vector<16x128xf32> to vector<16x128xbf16>
    %c0_32 = arith.constant 0 : index
    %c0_33 = arith.constant 0 : index
    %53 = vector.load %arg10[%c0_32, %c0_33] : memref<128x128xbf16, #tpu.memory_space<vmem>>, vector<128x128xbf16>
    %cst_34 = arith.constant dense<0.000000e+00> : vector<16x128xf32>
    %54 = tpu.matmul %52, %53, %cst_34 {dimension_numbers = #tpu.dot_dimension_numbers<[1], [0], [0], [1], [0, 0, 1, 1], [], []>} : vector<16x128xbf16>, vector<128x128xbf16>, vector<16x128xf32> -> vector<16x128xf32>
    %c0_35 = arith.constant 0 : index
    %c0_36 = arith.constant 0 : index
    %55 = vector.load %arg11[%c0_35, %c0_36] : memref<1x128xf32, #tpu.memory_space<vmem>>, vector<1x128xf32>
    %56 = vector.broadcast %55 : vector<1x128xf32> to vector<16x128xf32>
    %57 = arith.addf %54, %56 : vector<16x128xf32>
    %cst_37 = arith.constant 0.000000e+00 : f32
    %58 = vector.broadcast %cst_37 : f32 to vector<16x128xf32>
    %59 = arith.subf %58, %57 : vector<16x128xf32>
    %60 = math.exp %59 : vector<16x128xf32>
    %cst_38 = arith.constant 1.000000e+00 : f32
    %61 = vector.broadcast %cst_38 : f32 to vector<16x128xf32>
    %62 = arith.addf %61, %60 : vector<16x128xf32>
    %cst_39 = arith.constant 1.000000e+00 : f32
    %63 = vector.broadcast %cst_39 : f32 to vector<16x128xf32>
    %64 = arith.divf %63, %62 : vector<16x128xf32>
    %65 = arith.truncf %64 : vector<16x128xf32> to vector<16x128xbf16>
    %c0_40 = arith.constant 0 : index
    %c0_41 = arith.constant 0 : index
    %66 = vector.load %arg12[%c0_40, %c0_41] : memref<128x128xbf16, #tpu.memory_space<vmem>>, vector<128x128xbf16>
    %cst_42 = arith.constant dense<0.000000e+00> : vector<16x128xf32>
    %67 = tpu.matmul %65, %66, %cst_42 {dimension_numbers = #tpu.dot_dimension_numbers<[1], [0], [0], [1], [0, 0, 1, 1], [], []>} : vector<16x128xbf16>, vector<128x128xbf16>, vector<16x128xf32> -> vector<16x128xf32>
    %c0_43 = arith.constant 0 : index
    %c0_44 = arith.constant 0 : index
    %68 = vector.load %arg13[%c0_43, %c0_44] : memref<1x128xf32, #tpu.memory_space<vmem>>, vector<1x128xf32>
    %69 = vector.broadcast %68 : vector<1x128xf32> to vector<16x128xf32>
    %70 = arith.addf %67, %69 : vector<16x128xf32>
    %71 = tpu.iota {dimensions = array<i32: 1>} : vector<16x128xi32>
    %c10_i32 = arith.constant 10 : i32
    %72 = vector.broadcast %c10_i32 : i32 to vector<16x128xi32>
    %73 = arith.cmpi slt, %71, %72 : vector<16x128xi32>
    %cst_45 = arith.constant -1.000000e+30 : f32
    %74 = vector.broadcast %cst_45 : f32 to vector<16x128xf32>
    %75 = arith.select %73, %70, %74 : vector<16x128xi1>, vector<16x128xf32>
    %cst_46 = arith.constant dense<0xFF800000> : vector<16xf32>
    %76 = vector.multi_reduction <maximumf>, %75, %cst_46 [1] : vector<16x128xf32> to vector<16xf32>
    %77 = vector.shape_cast %76 : vector<16xf32> to vector<16x1xf32>
    %78 = vector.broadcast %77 : vector<16x1xf32> to vector<16x128xf32>
    %79 = arith.subf %75, %78 : vector<16x128xf32>
    %80 = math.exp %79 : vector<16x128xf32>
    %cst_47 = arith.constant dense<0.000000e+00> : vector<16xf32>
    %81 = vector.multi_reduction <add>, %80, %cst_47 [1] : vector<16x128xf32> to vector<16xf32>
    %82 = vector.shape_cast %81 : vector<16xf32> to vector<16x1xf32>
    %83 = math.log %82 : vector<16x1xf32>
    %84 = vector.broadcast %83 : vector<16x1xf32> to vector<16x128xf32>
    %85 = arith.subf %79, %84 : vector<16x128xf32>
    %c0_48 = arith.constant 0 : index
    %c0_49 = arith.constant 0 : index
    %86 = vector.load %arg14[%c0_48, %c0_49] : memref<16x128xf32, #tpu.memory_space<vmem>>, vector<16x128xf32>
    tpu.vector_store %arg14[%c0_48, %c0_49], %85 {strides = array<i32>} : memref<16x128xf32, #tpu.memory_space<vmem>>, vector<16x128xf32>,
    return
  }
  func.func @transform_0(%arg0: i32) -> (i32, i32) {
    %c0_i32 = arith.constant 0 : i32
    %c0_i32_0 = arith.constant 0 : i32
    return %arg0, %c0_i32 : i32, i32
  }
  func.func @transform_1(%arg0: i32) -> (i32, i32) {
    %c0_i32 = arith.constant 0 : i32
    %c0_i32_0 = arith.constant 0 : i32
    %c0_i32_1 = arith.constant 0 : i32
    return %c0_i32, %c0_i32_0 : i32, i32
  }
  func.func @transform_2(%arg0: i32) -> (i32, i32) {
    %c0_i32 = arith.constant 0 : i32
    %c0_i32_0 = arith.constant 0 : i32
    %c0_i32_1 = arith.constant 0 : i32
    return %c0_i32, %c0_i32_0 : i32, i32
  }
  func.func @transform_3(%arg0: i32) -> (i32, i32) {
    %c0_i32 = arith.constant 0 : i32
    %c0_i32_0 = arith.constant 0 : i32
    %c0_i32_1 = arith.constant 0 : i32
    return %c0_i32, %c0_i32_0 : i32, i32
  }
  func.func @transform_4(%arg0: i32) -> (i32, i32) {
    %c0_i32 = arith.constant 0 : i32
    %c0_i32_0 = arith.constant 0 : i32
    %c0_i32_1 = arith.constant 0 : i32
    return %c0_i32, %c0_i32_0 : i32, i32
  }
  func.func @transform_5(%arg0: i32) -> (i32, i32) {
    %c0_i32 = arith.constant 0 : i32
    %c0_i32_0 = arith.constant 0 : i32
    %c0_i32_1 = arith.constant 0 : i32
    return %c0_i32, %c0_i32_0 : i32, i32
  }
  func.func @transform_6(%arg0: i32) -> (i32, i32) {
    %c0_i32 = arith.constant 0 : i32
    %c0_i32_0 = arith.constant 0 : i32
    %c0_i32_1 = arith.constant 0 : i32
    return %c0_i32, %c0_i32_0 : i32, i32
  }
  func.func @transform_7(%arg0: i32) -> (i32, i32) {
    %c0_i32 = arith.constant 0 : i32
    %c0_i32_0 = arith.constant 0 : i32
    %c0_i32_1 = arith.constant 0 : i32
    return %c0_i32, %c0_i32_0 : i32, i32
  }
  func.func @transform_8(%arg0: i32) -> (i32, i32) {
    %c0_i32 = arith.constant 0 : i32
    %c0_i32_0 = arith.constant 0 : i32
    %c0_i32_1 = arith.constant 0 : i32
    return %c0_i32, %c0_i32_0 : i32, i32
  }
  func.func @transform_9(%arg0: i32) -> (i32, i32) {
    %c0_i32 = arith.constant 0 : i32
    %c0_i32_0 = arith.constant 0 : i32
    %c0_i32_1 = arith.constant 0 : i32
    return %c0_i32, %c0_i32_0 : i32, i32
  }
  func.func @transform_10(%arg0: i32) -> (i32, i32) {
    %c0_i32 = arith.constant 0 : i32
    %c0_i32_0 = arith.constant 0 : i32
    %c0_i32_1 = arith.constant 0 : i32
    return %c0_i32, %c0_i32_0 : i32, i32
  }
  func.func @transform_11(%arg0: i32) -> (i32, i32) {
    %c0_i32 = arith.constant 0 : i32
    %c0_i32_0 = arith.constant 0 : i32
    %c0_i32_1 = arith.constant 0 : i32
    return %c0_i32, %c0_i32_0 : i32, i32
  }
  func.func @transform_12(%arg0: i32) -> (i32, i32) {
    %c0_i32 = arith.constant 0 : i32
    %c0_i32_0 = arith.constant 0 : i32
    %c0_i32_1 = arith.constant 0 : i32
    return %c0_i32, %c0_i32_0 : i32, i32
  }
  func.func @transform_13(%arg0: i32) -> (i32, i32) {
    %c0_i32 = arith.constant 0 : i32
    %c0_i32_0 = arith.constant 0 : i32
    return %arg0, %c0_i32 : i32, i32
  }
}

</mosaic_0001>

<llo_original>
// kernel: tpu_custom_call.1
$region0: #{tpu_custom_call.1}
  #allocation0 [shape = 'u32[]', space=smem, size = 0x4, offset = 0x4, fixed_abs, tag = 'smem constant byte address 0x4 - core index']
  #allocation1 [shape = 'u32[144,128]{1,0:T(1,128)}', space=vmem, size = 0x12000, scoped, tag = 'internal scratch']
  %s0 = inlined_call_operand.hbm [shape: bf16[16,896], index: 0, kind: input, shape index: {}]
  %s1 = inlined_call_operand.hbm [shape: bf16[896,128], index: 1, kind: input, shape index: {}]
  %s2 = inlined_call_operand.vmem [shape: f32[1,128], index: 2, kind: input, shape index: {}]
  %s3 = inlined_call_operand.hbm [shape: bf16[128,128], index: 3, kind: input, shape index: {}]
  %s4 = inlined_call_operand.vmem [shape: f32[1,128], index: 4, kind: input, shape index: {}]
  %s5 = inlined_call_operand.hbm [shape: bf16[128,128], index: 5, kind: input, shape index: {}]
  %s6 = inlined_call_operand.vmem [shape: f32[1,128], index: 6, kind: input, shape index: {}]
  %s7 = inlined_call_operand.hbm [shape: bf16[128,128], index: 7, kind: input, shape index: {}]
  %s8 = inlined_call_operand.vmem [shape: f32[1,128], index: 8, kind: input, shape index: {}]
  %s9 = inlined_call_operand.hbm [shape: bf16[128,128], index: 9, kind: input, shape index: {}]
  %s10 = inlined_call_operand.vmem [shape: f32[1,128], index: 10, kind: input, shape index: {}]
  %s11 = inlined_call_operand.hbm [shape: bf16[128,128], index: 11, kind: input, shape index: {}]
  %s12 = inlined_call_operand.vmem [shape: f32[1,128], index: 12, kind: input, shape index: {}]
  %s13 = inlined_call_operand.hbm [shape: f32[16,128], index: 13, kind: output, shape index: {}]
  %s14 = sld [smem:[#allocation0]]
  $region90: #{tpu_custom_call.1} parent=0
    _
  %s16 = ssub.s32 1, %s14
  %s17 = scalar_select 0, %s16, %s14
  $region1: #{tpu_custom_call.1} parent=0
    #allocation2 [shape = 'u8[28672]{0}', space=vmem, size = 0x7000, scoped, tag = 'input window, operand 0, single buffered']
    #allocation3 [shape = 's32[1]{0}', space=sflag, size = 0x4, scoped, tag = 'scoped memory for tpu_custom_call.1']
    #allocation4 [shape = 's32[1]{0}', space=sflag, size = 0x4, scoped, tag = 'scoped memory for tpu_custom_call.1']
    #allocation5 [shape = 'u8[229376]{0}', space=vmem, size = 0x38000, scoped, tag = 'input window, operand 1, single buffered']
    #allocation6 [shape = 's32[1]{0}', space=sflag, size = 0x4, scoped, tag = 'scoped memory for tpu_custom_call.1']
    #allocation7 [shape = 'u8[32768]{0}', space=vmem, size = 0x8000, scoped, tag = 'input window, operand 3, single buffered']
    #allocation8 [shape = 'u8[32768]{0}', space=vmem, size = 0x8000, scoped, tag = 'input window, operand 5, single buffered']
    #allocation9 [shape = 's32[1]{0}', space=sflag, size = 0x4, scoped, tag = 'scoped memory for tpu_custom_call.1']
    #allocation10 [shape = 'u8[32768]{0}', space=vmem, size = 0x8000, scoped, tag = 'input window, operand 7, single buffered']
    #allocation11 [shape = 'u8[32768]{0}', space=vmem, size = 0x8000, scoped, tag = 'input window, operand 9, single buffered']
    #allocation12 [shape = 's32[1]{0}', space=sflag, size = 0x4, scoped, tag = 'scoped memory for tpu_custom_call.1']
    #allocation13 [shape = 'u8[32768]{0}', space=vmem, size = 0x8000, scoped, tag = 'input window, operand 11, single buffered']
    #allocation14 [shape = 'u8[8192]{0}', space=vmem, size = 0x2000, scoped, tag = 'output window, operand 0, single buffered']
    %18 = vsyncpa [#allocation3], 0
    %19 = vsyncpa [#allocation6], 0
    %20 = vsyncpa [#allocation9], 0
    %21 = vsyncpa [#allocation12], 0
    %22 = vsyncpa [#allocation4], 0
    // Predicated region
    $region2: #{tpu_custom_call.1} parent=1 // pred_check
      _
    $region3: #{tpu_custom_call.1} parent=1 // pred_check_branch
      %24 = sbr.rel (0) target = $region5
    $region4: #{tpu_custom_call.1} parent=1 // pred_region
      %s26 = ssub.s32 896, 896
      %27 = vsyncadd [#allocation3], %s26
      %s28 = sshll.u32 [#allocation2], 4
      %s29 = int_to_ptr.vmem [resolvable:$true] %s28
      %34 = dma.hbm_to_vmem [thread:$0]  %s0, 896, %s29, [#allocation3], 448, 448, 28
    $region5: #{tpu_custom_call.1} parent=1 // pred_fallthru
      _
    // Predicated region
    $region6: #{tpu_custom_call.1} parent=1 // pred_check
      _
    $region7: #{tpu_custom_call.1} parent=1 // pred_check_branch
      %36 = sbr.rel (0) target = $region9
    $region8: #{tpu_custom_call.1} parent=1 // pred_region
      %s38 = ssub.s32 7168, 7168
      %39 = vsyncadd [#allocation6], %s38
      %s40 = sshll.u32 [#allocation5], 4
      %s41 = int_to_ptr.vmem [resolvable:$true] %s40
      %46 = dma.hbm_to_vmem [thread:$0]  %s1, 7168, %s41, [#allocation6], 64, 64, 4
    $region9: #{tpu_custom_call.1} parent=1 // pred_fallthru
      _
    // Predicated region
    $region10: #{tpu_custom_call.1} parent=1 // pred_check
      _
    $region11: #{tpu_custom_call.1} parent=1 // pred_check_branch
      %48 = sbr.rel (0) target = $region13
    $region12: #{tpu_custom_call.1} parent=1 // pred_region
      _
    $region13: #{tpu_custom_call.1} parent=1 // pred_fallthru
      _
    // Predicated region
    $region14: #{tpu_custom_call.1} parent=1 // pred_check
      _
    $region15: #{tpu_custom_call.1} parent=1 // pred_check_branch
      %50 = sbr.rel (0) target = $region17
    $region16: #{tpu_custom_call.1} parent=1 // pred_region
      %s52 = ssub.s32 1024, 1024
      %53 = vsyncadd [#allocation6], %s52
      %s54 = sshll.u32 [#allocation7], 4
      %s55 = int_to_ptr.vmem [resolvable:$true] %s54
      %60 = dma.hbm_to_vmem [thread:$0]  %s3, 1024, %s55, [#allocation6], 64, 64, 4
    $region17: #{tpu_custom_call.1} parent=1 // pred_fallthru
      _
    // Predicated region
    $region18: #{tpu_custom_call.1} parent=1 // pred_check
      _
    $region19: #{tpu_custom_call.1} parent=1 // pred_check_branch
      %62 = sbr.rel (0) target = $region21
    $region20: #{tpu_custom_call.1} parent=1 // pred_region
      _
    $region21: #{tpu_custom_call.1} parent=1 // pred_fallthru
      _
    // Predicated region
    $region22: #{tpu_custom_call.1} parent=1 // pred_check
      _
    $region23: #{tpu_custom_call.1} parent=1 // pred_check_branch
      %64 = sbr.rel (0) target = $region25
    $region24: #{tpu_custom_call.1} parent=1 // pred_region
      %s66 = ssub.s32 1024, 1024
      %67 = vsyncadd [#allocation9], %s66
      %s68 = sshll.u32 [#allocation8], 4
      %s69 = int_to_ptr.vmem [resolvable:$true] %s68
      %74 = dma.hbm_to_vmem [thread:$0]  %s5, 1024, %s69, [#allocation9], 64, 64, 4
    $region25: #{tpu_custom_call.1} parent=1 // pred_fallthru
      _
    // Predicated region
    $region26: #{tpu_custom_call.1} parent=1 // pred_check
      _
    $region27: #{tpu_custom_call.1} parent=1 // pred_check_branch
      %76 = sbr.rel (0) target = $region29
    $region28: #{tpu_custom_call.1} parent=1 // pred_region
      _
    $region29: #{tpu_custom_call.1} parent=1 // pred_fallthru
      _
    // Predicated region
    $region30: #{tpu_custom_call.1} parent=1 // pred_check
      _
    $region31: #{tpu_custom_call.1} parent=1 // pred_check_branch
      %78 = sbr.rel (0) target = $region33
    $region32: #{tpu_custom_call.1} parent=1 // pred_region
      %s80 = ssub.s32 1024, 1024
      %81 = vsyncadd [#allocation9], %s80
      %s82 = sshll.u32 [#allocation10], 4
      %s83 = int_to_ptr.vmem [resolvable:$true] %s82
      %88 = dma.hbm_to_vmem [thread:$0]  %s7, 1024, %s83, [#allocation9], 64, 64, 4
    $region33: #{tpu_custom_call.1} parent=1 // pred_fallthru
      _
    // Predicated region
    $region34: #{tpu_custom_call.1} parent=1 // pred_check
      _
    $region35: #{tpu_custom_call.1} parent=1 // pred_check_branch
      %90 = sbr.rel (0) target = $region37
    $region36: #{tpu_custom_call.1} parent=1 // pred_region
      _
    $region37: #{tpu_custom_call.1} parent=1 // pred_fallthru
      _
    // Predicated region
    $region38: #{tpu_custom_call.1} parent=1 // pred_check
      _
    $region39: #{tpu_custom_call.1} parent=1 // pred_check_branch
      %92 = sbr.rel (0) target = $region41
    $region40: #{tpu_custom_call.1} parent=1 // pred_region
      %s94 = ssub.s32 1024, 1024
      %95 = vsyncadd [#allocation12], %s94
      %s96 = sshll.u32 [#allocation11], 4
      %s97 = int_to_ptr.vmem [resolvable:$true] %s96
      %102 = dma.hbm_to_vmem [thread:$0]  %s9, 1024, %s97, [#allocation12], 64, 64, 4
    $region41: #{tpu_custom_call.1} parent=1 // pred_fallthru
      _
    // Predicated region
    $region42: #{tpu_custom_call.1} parent=1 // pred_check
      _
    $region43: #{tpu_custom_call.1} parent=1 // pred_check_branch
      %104 = sbr.rel (0) target = $region45
    $region44: #{tpu_custom_call.1} parent=1 // pred_region
      _
    $region45: #{tpu_custom_call.1} parent=1 // pred_fallthru
      _
    // Predicated region
    $region46: #{tpu_custom_call.1} parent=1 // pred_check
      _
    $region47: #{tpu_custom_call.1} parent=1 // pred_check_branch
      %106 = sbr.rel (0) target = $region49
    $region48: #{tpu_custom_call.1} parent=1 // pred_region
      %s108 = ssub.s32 1024, 1024
      %109 = vsyncadd [#allocation12], %s108
      %s110 = sshll.u32 [#allocation13], 4
      %s111 = int_to_ptr.vmem [resolvable:$true] %s110
      %116 = dma.hbm_to_vmem [thread:$0]  %s11, 1024, %s111, [#allocation12], 64, 64, 4
    $region49: #{tpu_custom_call.1} parent=1 // pred_fallthru
      _
    // Predicated region
    $region50: #{tpu_custom_call.1} parent=1 // pred_check
      _
    $region51: #{tpu_custom_call.1} parent=1 // pred_check_branch
      %118 = sbr.rel (0) target = $region53
    $region52: #{tpu_custom_call.1} parent=1 // pred_region
      _
    $region53: #{tpu_custom_call.1} parent=1 // pred_fallthru
      _
    // Predicated region
    $region54: #{tpu_custom_call.1} parent=1 // pred_check
      _
    $region55: #{tpu_custom_call.1} parent=1 // pred_check_branch
      %120 = sbr.rel (0) target = $region57
    $region56: #{tpu_custom_call.1} parent=1 // pred_region
      %121 = dma.done [#allocation3], 896
    $region57: #{tpu_custom_call.1} parent=1 // pred_fallthru
      _
    // Predicated region
    $region58: #{tpu_custom_call.1} parent=1 // pred_check
      _
    $region59: #{tpu_custom_call.1} parent=1 // pred_check_branch
      %123 = sbr.rel (0) target = $region61
    $region60: #{tpu_custom_call.1} parent=1 // pred_region
      %124 = dma.done [#allocation6], 7168
    $region61: #{tpu_custom_call.1} parent=1 // pred_fallthru
      _
    // Predicated region
    $region62: #{tpu_custom_call.1} parent=1 // pred_check
      _
    $region63: #{tpu_custom_call.1} parent=1 // pred_check_branch
      %126 = sbr.rel (0) target = $region65
    $region64: #{tpu_custom_call.1} parent=1 // pred_region
      %127 = dma.done [#allocation6], 1024
    $region65: #{tpu_custom_call.1} parent=1 // pred_fallthru
      _
    // Predicated region
    $region66: #{tpu_custom_call.1} parent=1 // pred_check
      _
    $region67: #{tpu_custom_call.1} parent=1 // pred_check_branch
      %129 = sbr.rel (0) target = $region69
    $region68: #{tpu_custom_call.1} parent=1 // pred_region
      %130 = dma.done [#allocation9], 1024
    $region69: #{tpu_custom_call.1} parent=1 // pred_fallthru
      _
    // Predicated region
    $region70: #{tpu_custom_call.1} parent=1 // pred_check
      _
    $region71: #{tpu_custom_call.1} parent=1 // pred_check_branch
      %132 = sbr.rel (0) target = $region73
    $region72: #{tpu_custom_call.1} parent=1 // pred_region
      %133 = dma.done [#allocation9], 1024
    $region73: #{tpu_custom_call.1} parent=1 // pred_fallthru
      _
    // Predicated region
    $region74: #{tpu_custom_call.1} parent=1 // pred_check
      _
    $region75: #{tpu_custom_call.1} parent=1 // pred_check_branch
      %135 = sbr.rel (0) target = $region77
    $region76: #{tpu_custom_call.1} parent=1 // pred_region
      %136 = dma.done [#allocation12], 1024
    $region77: #{tpu_custom_call.1} parent=1 // pred_fallthru
      _
    // Predicated region
    $region78: #{tpu_custom_call.1} parent=1 // pred_check
      _
    $region79: #{tpu_custom_call.1} parent=1 // pred_check_branch
      %138 = sbr.rel (0) target = $region81
    $region80: #{tpu_custom_call.1} parent=1 // pred_region
      %139 = dma.done [#allocation12], 1024
    $region81: #{tpu_custom_call.1} parent=1 // pred_fallthru
      _
    %v141 = vld [vmem:[#allocation2] sm:$0xff]
    %v142 = vld [vmem:[#allocation2 + $0x8] sm:$0xff]
    %v143 = vld [vmem:[#allocation2 + $0x10] sm:$0xff]
    %v144 = vld [vmem:[#allocation2 + $0x18] sm:$0xf]
    %v145 = vld [vmem:[#allocation2 + $0x1c] sm:$0xff]
    %v146 = vld [vmem:[#allocation2 + $0x24] sm:$0xff]
    %v147 = vld [vmem:[#allocation2 + $0x2c] sm:$0xff]
    %v148 = vld [vmem:[#allocation2 + $0x34] sm:$0xf]
    %v149 = vld [vmem:[#allocation5] sm:$0xf]
    %v150 = vld [vmem:[#allocation5 + $0x4] sm:$0xf]
    %v151 = vld [vmem:[#allocation5 + $0x8] sm:$0xf]
    %v152 = vld [vmem:[#allocation5 + $0xc] sm:$0xf]
    %v153 = vld [vmem:[#allocation5 + $0x10] sm:$0xf]
    %v154 = vld [vmem:[#allocation5 + $0x14] sm:$0xf]
    %v155 = vld [vmem:[#allocation5 + $0x18] sm:$0xf]
    %v156 = vld [vmem:[#allocation5 + $0x1c] sm:$0xf]
    %v157 = vld [vmem:[#allocation5 + $0x20] sm:$0xf]
    %v158 = vld [vmem:[#allocation5 + $0x24] sm:$0xf]
    %v159 = vld [vmem:[#allocation5 + $0x28] sm:$0xf]
    %v160 = vld [vmem:[#allocation5 + $0x2c] sm:$0xf]
    %v161 = vld [vmem:[#allocation5 + $0x30] sm:$0xf]
    %v162 = vld [vmem:[#allocation5 + $0x34] sm:$0xf]
    %v163 = vld [vmem:[#allocation5 + $0x38] sm:$0xf]
    %v164 = vld [vmem:[#allocation5 + $0x3c] sm:$0xf]
    %v165 = vld [vmem:[#allocation5 + $0x40] sm:$0xf]
    %v166 = vld [vmem:[#allocation5 + $0x44] sm:$0xf]
    %v167 = vld [vmem:[#allocation5 + $0x48] sm:$0xf]
    %v168 = vld [vmem:[#allocation5 + $0x4c] sm:$0xf]
    %v169 = vld [vmem:[#allocation5 + $0x50] sm:$0xf]
    %v170 = vld [vmem:[#allocation5 + $0x54] sm:$0xf]
    %v171 = vld [vmem:[#allocation5 + $0x58] sm:$0xf]
    %v172 = vld [vmem:[#allocation5 + $0x5c] sm:$0xf]
    %v173 = vld [vmem:[#allocation5 + $0x60] sm:$0xf]
    %v174 = vld [vmem:[#allocation5 + $0x64] sm:$0xf]
    %v175 = vld [vmem:[#allocation5 + $0x68] sm:$0xf]
    %v176 = vld [vmem:[#allocation5 + $0x6c] sm:$0xf]
    %v177 = vld [vmem:[#allocation5 + $0x70] sm:$0xf]
    %v178 = vld [vmem:[#allocation5 + $0x74] sm:$0xf]
    %v179 = vld [vmem:[#allocation5 + $0x78] sm:$0xf]
    %v180 = vld [vmem:[#allocation5 + $0x7c] sm:$0xf]
    %v181 = vld [vmem:[#allocation5 + $0x80] sm:$0xf]
    %v182 = vld [vmem:[#allocation5 + $0x84] sm:$0xf]
    %v183 = vld [vmem:[#allocation5 + $0x88] sm:$0xf]
    %v184 = vld [vmem:[#allocation5 + $0x8c] sm:$0xf]
    %v185 = vld [vmem:[#allocation5 + $0x90] sm:$0xf]
    %v186 = vld [vmem:[#allocation5 + $0x94] sm:$0xf]
    %v187 = vld [vmem:[#allocation5 + $0x98] sm:$0xf]
    %v188 = vld [vmem:[#allocation5 + $0x9c] sm:$0xf]
    %v189 = vld [vmem:[#allocation5 + $0xa0] sm:$0xf]
    %v190 = vld [vmem:[#allocation5 + $0xa4] sm:$0xf]
    %v191 = vld [vmem:[#allocation5 + $0xa8] sm:$0xf]
    %v192 = vld [vmem:[#allocation5 + $0xac] sm:$0xf]
    %v193 = vld [vmem:[#allocation5 + $0xb0] sm:$0xf]
    %v194 = vld [vmem:[#allocation5 + $0xb4] sm:$0xf]
    %v195 = vld [vmem:[#allocation5 + $0xb8] sm:$0xf]
    %v196 = vld [vmem:[#allocation5 + $0xbc] sm:$0xf]
    %v197 = vld [vmem:[#allocation5 + $0xc0] sm:$0xf]
    %v198 = vld [vmem:[#allocation5 + $0xc4] sm:$0xf]
    %v199 = vld [vmem:[#allocation5 + $0xc8] sm:$0xf]
    %v200 = vld [vmem:[#allocation5 + $0xcc] sm:$0xf]
    %v201 = vld [vmem:[#allocation5 + $0xd0] sm:$0xf]
    %v202 = vld [vmem:[#allocation5 + $0xd4] sm:$0xf]
    %v203 = vld [vmem:[#allocation5 + $0xd8] sm:$0xf]
    %v204 = vld [vmem:[#allocation5 + $0xdc] sm:$0xf]
    %v205 = vld [vmem:[#allocation5 + $0xe0] sm:$0xf]
    %v206 = vld [vmem:[#allocation5 + $0xe4] sm:$0xf]
    %v207 = vld [vmem:[#allocation5 + $0xe8] sm:$0xf]
    %v208 = vld [vmem:[#allocation5 + $0xec] sm:$0xf]
    %v209 = vld [vmem:[#allocation5 + $0xf0] sm:$0xf]
    %v210 = vld [vmem:[#allocation5 + $0xf4] sm:$0xf]
    %v211 = vld [vmem:[#allocation5 + $0xf8] sm:$0xf]
    %v212 = vld [vmem:[#allocation5 + $0xfc] sm:$0xf]
    %v213 = vld [vmem:[#allocation5 + $0x100] sm:$0xf]
    %v214 = vld [vmem:[#allocation5 + $0x104] sm:$0xf]
    %v215 = vld [vmem:[#allocation5 + $0x108] sm:$0xf]
    %v216 = vld [vmem:[#allocation5 + $0x10c] sm:$0xf]
    %v217 = vld [vmem:[#allocation5 + $0x110] sm:$0xf]
    %v218 = vld [vmem:[#allocation5 + $0x114] sm:$0xf]
    %v219 = vld [vmem:[#allocation5 + $0x118] sm:$0xf]
    %v220 = vld [vmem:[#allocation5 + $0x11c] sm:$0xf]
    %v221 = vld [vmem:[#allocation5 + $0x120] sm:$0xf]
    %v222 = vld [vmem:[#allocation5 + $0x124] sm:$0xf]
    %v223 = vld [vmem:[#allocation5 + $0x128] sm:$0xf]
    %v224 = vld [vmem:[#allocation5 + $0x12c] sm:$0xf]
    %v225 = vld [vmem:[#allocation5 + $0x130] sm:$0xf]
    %v226 = vld [vmem:[#allocation5 + $0x134] sm:$0xf]
    %v227 = vld [vmem:[#allocation5 + $0x138] sm:$0xf]
    %v228 = vld [vmem:[#allocation5 + $0x13c] sm:$0xf]
    %v229 = vld [vmem:[#allocation5 + $0x140] sm:$0xf]
    %v230 = vld [vmem:[#allocation5 + $0x144] sm:$0xf]
    %v231 = vld [vmem:[#allocation5 + $0x148] sm:$0xf]
    %v232 = vld [vmem:[#allocation5 + $0x14c] sm:$0xf]
    %v233 = vld [vmem:[#allocation5 + $0x150] sm:$0xf]
    %v234 = vld [vmem:[#allocation5 + $0x154] sm:$0xf]
    %v235 = vld [vmem:[#allocation5 + $0x158] sm:$0xf]
    %v236 = vld [vmem:[#allocation5 + $0x15c] sm:$0xf]
    %v237 = vld [vmem:[#allocation5 + $0x160] sm:$0xf]
    %v238 = vld [vmem:[#allocation5 + $0x164] sm:$0xf]
    %v239 = vld [vmem:[#allocation5 + $0x168] sm:$0xf]
    %v240 = vld [vmem:[#allocation5 + $0x16c] sm:$0xf]
    %v241 = vld [vmem:[#allocation5 + $0x170] sm:$0xf]
    %v242 = vld [vmem:[#allocation5 + $0x174] sm:$0xf]
    %v243 = vld [vmem:[#allocation5 + $0x178] sm:$0xf]
    %v244 = vld [vmem:[#allocation5 + $0x17c] sm:$0xf]
    %v245 = vld [vmem:[#allocation5 + $0x180] sm:$0xf]
    %v246 = vld [vmem:[#allocation5 + $0x184] sm:$0xf]
    %v247 = vld [vmem:[#allocation5 + $0x188] sm:$0xf]
    %v248 = vld [vmem:[#allocation5 + $0x18c] sm:$0xf]
    %v249 = vld [vmem:[#allocation5 + $0x190] sm:$0xf]
    %v250 = vld [vmem:[#allocation5 + $0x194] sm:$0xf]
    %v251 = vld [vmem:[#allocation5 + $0x198] sm:$0xf]
    %v252 = vld [vmem:[#allocation5 + $0x19c] sm:$0xf]
    %v253 = vld [vmem:[#allocation5 + $0x1a0] sm:$0xf]
    %v254 = vld [vmem:[#allocation5 + $0x1a4] sm:$0xf]
    %v255 = vld [vmem:[#allocation5 + $0x1a8] sm:$0xf]
    %v256 = vld [vmem:[#allocation5 + $0x1ac] sm:$0xf]
    %v257 = vld [vmem:[#allocation5 + $0x1b0] sm:$0xf]
    %v258 = vld [vmem:[#allocation5 + $0x1b4] sm:$0xf]
    %v259 = vld [vmem:[#allocation5 + $0x1b8] sm:$0xf]
    %v260 = vld [vmem:[#allocation5 + $0x1bc] sm:$0xf]
    %v261 = vld [vmem:[%s2] sm:$0x1]
    %v263 = vlaneseq
    %v264 = vshrl.u32 %v263, 7
    %v265 = vsub.s32 0, %v264
    %v266 = vrot.slane %v261, %v265
    %v276 = vunpack.c.l.b16 %v141
    %v277 = vunpack.c.h.b16 %v141
    %v278 = vunpack.c.l.b16 %v142
    %v279 = vunpack.c.h.b16 %v142
    %v280 = vunpack.c.l.b16 %v143
    %v281 = vunpack.c.h.b16 %v143
    %v282 = vunpack.c.l.b16 %v144
    %v283 = vunpack.c.l.b16 %v145
    %v284 = vunpack.c.h.b16 %v145
    %v285 = vunpack.c.l.b16 %v146
    %v286 = vunpack.c.h.b16 %v146
    %v287 = vunpack.c.l.b16 %v147
    %v288 = vunpack.c.h.b16 %v147
    %v289 = vunpack.c.l.b16 %v148
    %v290 = vpack.c.b16 %v283, %v276
    %v291 = vpack.c.b16 %v284, %v277
    %v292 = vpack.c.b16 %v285, %v278
    %v293 = vpack.c.b16 %v286, %v279
    %v294 = vpack.c.b16 %v287, %v280
    %v295 = vpack.c.b16 %v288, %v281
    %v296 = vpack.c.b16 %v289, %v282
    %v416 = vunpack.c.l.b16 %v149
    %v417 = vunpack.c.l.b16 %v150
    %v418 = vunpack.c.l.b16 %v151
    %v419 = vunpack.c.l.b16 %v152
    %v420 = vunpack.c.l.b16 %v153
    %v421 = vunpack.c.l.b16 %v154
    %v422 = vunpack.c.l.b16 %v155
    %v423 = vunpack.c.l.b16 %v156
    %v424 = vunpack.c.l.b16 %v157
    %v425 = vunpack.c.l.b16 %v158
    %v426 = vunpack.c.l.b16 %v159
    %v427 = vunpack.c.l.b16 %v160
    %v428 = vunpack.c.l.b16 %v161
    %v429 = vunpack.c.l.b16 %v162
    %v430 = vunpack.c.l.b16 %v163
    %v431 = vunpack.c.l.b16 %v164
    %v432 = vunpack.c.l.b16 %v165
    %v433 = vunpack.c.l.b16 %v166
    %v434 = vunpack.c.l.b16 %v167
    %v435 = vunpack.c.l.b16 %v168
    %v436 = vunpack.c.l.b16 %v169
    %v437 = vunpack.c.l.b16 %v170
    %v438 = vunpack.c.l.b16 %v171
    %v439 = vunpack.c.l.b16 %v172
    %v440 = vunpack.c.l.b16 %v173
    %v441 = vunpack.c.l.b16 %v174
    %v442 = vunpack.c.l.b16 %v175
    %v443 = vunpack.c.l.b16 %v176
    %v444 = vunpack.c.l.b16 %v177
    %v445 = vunpack.c.l.b16 %v178
    %v446 = vunpack.c.l.b16 %v179
    %v447 = vunpack.c.l.b16 %v180
    %v448 = vunpack.c.l.b16 %v181
    %v449 = vunpack.c.l.b16 %v182
    %v450 = vunpack.c.l.b16 %v183
    %v451 = vunpack.c.l.b16 %v184
    %v452 = vunpack.c.l.b16 %v185
    %v453 = vunpack.c.l.b16 %v186
    %v454 = vunpack.c.l.b16 %v187
    %v455 = vunpack.c.l.b16 %v188
    %v456 = vunpack.c.l.b16 %v189
    %v457 = vunpack.c.l.b16 %v190
    %v458 = vunpack.c.l.b16 %v191
    %v459 = vunpack.c.l.b16 %v192
    %v460 = vunpack.c.l.b16 %v193
    %v461 = vunpack.c.l.b16 %v194
    %v462 = vunpack.c.l.b16 %v195
    %v463 = vunpack.c.l.b16 %v196
    %v464 = vunpack.c.l.b16 %v197
    %v465 = vunpack.c.l.b16 %v198
    %v466 = vunpack.c.l.b16 %v199
    %v467 = vunpack.c.l.b16 %v200
    %v468 = vunpack.c.l.b16 %v201
    %v469 = vunpack.c.l.b16 %v202
    %v470 = vunpack.c.l.b16 %v203
    %v471 = vunpack.c.l.b16 %v204
    %v472 = vunpack.c.l.b16 %v205
    %v473 = vunpack.c.l.b16 %v206
    %v474 = vunpack.c.l.b16 %v207
    %v475 = vunpack.c.l.b16 %v208
    %v476 = vunpack.c.l.b16 %v209
    %v477 = vunpack.c.l.b16 %v210
    %v478 = vunpack.c.l.b16 %v211
    %v479 = vunpack.c.l.b16 %v212
    %v480 = vunpack.c.l.b16 %v213
    %v481 = vunpack.c.l.b16 %v214
    %v482 = vunpack.c.l.b16 %v215
    %v483 = vunpack.c.l.b16 %v216
    %v484 = vunpack.c.l.b16 %v217
    %v485 = vunpack.c.l.b16 %v218
    %v486 = vunpack.c.l.b16 %v219
    %v487 = vunpack.c.l.b16 %v220
    %v488 = vunpack.c.l.b16 %v221
    %v489 = vunpack.c.l.b16 %v222
    %v490 = vunpack.c.l.b16 %v223
    %v491 = vunpack.c.l.b16 %v224
    %v492 = vunpack.c.l.b16 %v225
    %v493 = vunpack.c.l.b16 %v226
    %v494 = vunpack.c.l.b16 %v227
    %v495 = vunpack.c.l.b16 %v228
    %v496 = vunpack.c.l.b16 %v229
    %v497 = vunpack.c.l.b16 %v230
    %v498 = vunpack.c.l.b16 %v231
    %v499 = vunpack.c.l.b16 %v232
    %v500 = vunpack.c.l.b16 %v233
    %v501 = vunpack.c.l.b16 %v234
    %v502 = vunpack.c.l.b16 %v235
    %v503 = vunpack.c.l.b16 %v236
    %v504 = vunpack.c.l.b16 %v237
    %v505 = vunpack.c.l.b16 %v238
    %v506 = vunpack.c.l.b16 %v239
    %v507 = vunpack.c.l.b16 %v240
    %v508 = vunpack.c.l.b16 %v241
    %v509 = vunpack.c.l.b16 %v242
    %v510 = vunpack.c.l.b16 %v243
    %v511 = vunpack.c.l.b16 %v244
    %v512 = vunpack.c.l.b16 %v245
    %v513 = vunpack.c.l.b16 %v246
    %v514 = vunpack.c.l.b16 %v247
    %v515 = vunpack.c.l.b16 %v248
    %v516 = vunpack.c.l.b16 %v249
    %v517 = vunpack.c.l.b16 %v250
    %v518 = vunpack.c.l.b16 %v251
    %v519 = vunpack.c.l.b16 %v252
    %v520 = vunpack.c.l.b16 %v253
    %v521 = vunpack.c.l.b16 %v254
    %v522 = vunpack.c.l.b16 %v255
    %v523 = vunpack.c.l.b16 %v256
    %v524 = vunpack.c.l.b16 %v257
    %v525 = vunpack.c.l.b16 %v258
    %v526 = vunpack.c.l.b16 %v259
    %v527 = vunpack.c.l.b16 %v260
    %v528 = vpack.c.b16 %v417, %v416
    %v529 = vpack.c.b16 %v419, %v418
    %v530 = vpack.c.b16 %v421, %v420
    %v531 = vpack.c.b16 %v423, %v422
    %v532 = vpack.c.b16 %v425, %v424
    %v533 = vpack.c.b16 %v427, %v426
    %v534 = vpack.c.b16 %v429, %v428
    %v535 = vpack.c.b16 %v431, %v430
    %v536 = vpack.c.b16 %v433, %v432
    %v537 = vpack.c.b16 %v435, %v434
    %v538 = vpack.c.b16 %v437, %v436
    %v539 = vpack.c.b16 %v439, %v438
    %v540 = vpack.c.b16 %v441, %v440
    %v541 = vpack.c.b16 %v443, %v442
    %v542 = vpack.c.b16 %v445, %v444
    %v543 = vpack.c.b16 %v447, %v446
    %v544 = vpack.c.b16 %v449, %v448
    %v545 = vpack.c.b16 %v451, %v450
    %v546 = vpack.c.b16 %v453, %v452
    %v547 = vpack.c.b16 %v455, %v454
    %v548 = vpack.c.b16 %v457, %v456
    %v549 = vpack.c.b16 %v459, %v458
    %v550 = vpack.c.b16 %v461, %v460
    %v551 = vpack.c.b16 %v463, %v462
    %v552 = vpack.c.b16 %v465, %v464
    %v553 = vpack.c.b16 %v467, %v466
    %v554 = vpack.c.b16 %v469, %v468
    %v555 = vpack.c.b16 %v471, %v470
    %v556 = vpack.c.b16 %v473, %v472
    %v557 = vpack.c.b16 %v475, %v474
    %v558 = vpack.c.b16 %v477, %v476
    %v559 = vpack.c.b16 %v479, %v478
    %v560 = vpack.c.b16 %v481, %v480
    %v561 = vpack.c.b16 %v483, %v482
    %v562 = vpack.c.b16 %v485, %v484
    %v563 = vpack.c.b16 %v487, %v486
    %v564 = vpack.c.b16 %v489, %v488
    %v565 = vpack.c.b16 %v491, %v490
    %v566 = vpack.c.b16 %v493, %v492
    %v567 = vpack.c.b16 %v495, %v494
    %v568 = vpack.c.b16 %v497, %v496
    %v569 = vpack.c.b16 %v499, %v498
    %v570 = vpack.c.b16 %v501, %v500
    %v571 = vpack.c.b16 %v503, %v502
    %v572 = vpack.c.b16 %v505, %v504
    %v573 = vpack.c.b16 %v507, %v506
    %v574 = vpack.c.b16 %v509, %v508
    %v575 = vpack.c.b16 %v511, %v510
    %v576 = vpack.c.b16 %v513, %v512
    %v577 = vpack.c.b16 %v515, %v514
    %v578 = vpack.c.b16 %v517, %v516
    %v579 = vpack.c.b16 %v519, %v518
    %v580 = vpack.c.b16 %v521, %v520
    %v581 = vpack.c.b16 %v523, %v522
    %v582 = vpack.c.b16 %v525, %v524
    %v583 = vpack.c.b16 %v527, %v526
    %640 = vmatprep.subr.bf16.mxu0 0
    %641 = vmatpush1.bf16.msra.mxu0 %v528
    %642 = vmatprep.subr.bf16.mxu0 0
    %643 = vmatpush1.bf16.msra.mxu0 %v529
    %644 = vmatprep.subr.bf16.mxu0 0
    %645 = vmatpush1.bf16.msra.mxu0 %v530
    %646 = vmatprep.subr.bf16.mxu0 0
    %647 = vmatpush1.bf16.msra.mxu0 %v531
    %648 = vmatprep.subr.bf16.mxu0 0
    %649 = vmatpush1.bf16.msra.mxu0 %v532
    %650 = vmatprep.subr.bf16.mxu0 0
    %651 = vmatpush1.bf16.msra.mxu0 %v533
    %652 = vmatprep.subr.bf16.mxu0 0
    %653 = vmatpush1.bf16.msra.mxu0 %v534
    %654 = vmatprep.subr.bf16.mxu0 0
    %655 = vmatpush1.bf16.msra.mxu0 %v535
    %656 = vmatprep.subr.bf16.mxu0 0
    %657 = vmatpush1.bf16.msra.mxu0 %v536
    %658 = vmatprep.subr.bf16.mxu0 0
    %659 = vmatpush1.bf16.msra.mxu0 %v537
    %660 = vmatprep.subr.bf16.mxu0 0
    %661 = vmatpush1.bf16.msra.mxu0 %v538
    %662 = vmatprep.subr.bf16.mxu0 0
    %663 = vmatpush1.bf16.msra.mxu0 %v539
    %664 = vmatprep.subr.bf16.mxu0 0
    %665 = vmatpush1.bf16.msra.mxu0 %v540
    %666 = vmatprep.subr.bf16.mxu0 0
    %667 = vmatpush1.bf16.msra.mxu0 %v541
    %668 = vmatprep.subr.bf16.mxu0 0
    %669 = vmatpush1.bf16.msra.mxu0 %v542
    %670 = vmatprep.subr.bf16.mxu0 0
    %671 = vmatpush1.bf16.msra.mxu0 %v543
    %672 = vmatprep.mubr.bf16.mxu0 %v291
    %673 = vmatmul.mubr.bf16.gmra.mrb[0].mxu0 %v290
    %v674 = vpop.f32.mrb[0].mxu0
    %v675 = vadd.f32 %v266, %v674
    %v676 = vpop.f32.mrb[0].mxu0
    %v677 = vpop.f32.mrb[0].mxu0
    %v678 = vadd.f32 %v266, %v677
    %v679 = vpop.f32.mrb[0].mxu0
    %680 = vdwg.mxu0
    %681 = vmatprep.subr.bf16.mxu0 0
    %682 = vmatpush1.bf16.msra.mxu0 %v544
    %683 = vmatprep.subr.bf16.mxu0 0
    %684 = vmatpush1.bf16.msra.mxu0 %v545
    %685 = vmatprep.subr.bf16.mxu0 0
    %686 = vmatpush1.bf16.msra.mxu0 %v546
    %687 = vmatprep.subr.bf16.mxu0 0
    %688 = vmatpush1.bf16.msra.mxu0 %v547
    %689 = vmatprep.subr.bf16.mxu0 0
    %690 = vmatpush1.bf16.msra.mxu0 %v548
    %691 = vmatprep.subr.bf16.mxu0 0
    %692 = vmatpush1.bf16.msra.mxu0 %v549
    %693 = vmatprep.subr.bf16.mxu0 0
    %694 = vmatpush1.bf16.msra.mxu0 %v550
    %695 = vmatprep.subr.bf16.mxu0 0
    %696 = vmatpush1.bf16.msra.mxu0 %v551
    %697 = vmatprep.subr.bf16.mxu0 0
    %698 = vmatpush1.bf16.msra.mxu0 %v552
    %699 = vmatprep.subr.bf16.mxu0 0
    %700 = vmatpush1.bf16.msra.mxu0 %v553
    %701 = vmatprep.subr.bf16.mxu0 0
    %702 = vmatpush1.bf16.msra.mxu0 %v554
    %703 = vmatprep.subr.bf16.mxu0 0
    %704 = vmatpush1.bf16.msra.mxu0 %v555
    %705 = vmatprep.subr.bf16.mxu0 0
    %706 = vmatpush1.bf16.msra.mxu0 %v556
    %707 = vmatprep.subr.bf16.mxu0 0
    %708 = vmatpush1.bf16.msra.mxu0 %v557
    %709 = vmatprep.subr.bf16.mxu0 0
    %710 = vmatpush1.bf16.msra.mxu0 %v558
    %711 = vmatprep.subr.bf16.mxu0 0
    %712 = vmatpush1.bf16.msra.mxu0 %v559
    %713 = vmatprep.mubr.bf16.mxu0 %v293
    %714 = vmatmul.mubr.bf16.gmra.mrb[0].mxu0 %v292
    %v715 = vpop.f32.mrb[0].mxu0
    %v716 = vadd.f32 %v675, %v715
    %v717 = vpop.f32.mrb[0].mxu0
    %v718 = vpop.f32.mrb[0].mxu0
    %v719 = vadd.f32 %v678, %v718
    %v720 = vpop.f32.mrb[0].mxu0
    %721 = vdwg.mxu0
    %722 = vmatprep.subr.bf16.mxu0 0
    %723 = vmatpush1.bf16.msra.mxu0 %v560
    %724 = vmatprep.subr.bf16.mxu0 0
    %725 = vmatpush1.bf16.msra.mxu0 %v561
    %726 = vmatprep.subr.bf16.mxu0 0
    %727 = vmatpush1.bf16.msra.mxu0 %v562
    %728 = vmatprep.subr.bf16.mxu0 0
    %729 = vmatpush1.bf16.msra.mxu0 %v563
    %730 = vmatprep.subr.bf16.mxu0 0
    %731 = vmatpush1.bf16.msra.mxu0 %v564
    %732 = vmatprep.subr.bf16.mxu0 0
    %733 = vmatpush1.bf16.msra.mxu0 %v565
    %734 = vmatprep.subr.bf16.mxu0 0
    %735 = vmatpush1.bf16.msra.mxu0 %v566
    %736 = vmatprep.subr.bf16.mxu0 0
    %737 = vmatpush1.bf16.msra.mxu0 %v567
    %738 = vmatprep.subr.bf16.mxu0 0
    %739 = vmatpush1.bf16.msra.mxu0 %v568
    %740 = vmatprep.subr.bf16.mxu0 0
    %741 = vmatpush1.bf16.msra.mxu0 %v569
    %742 = vmatprep.subr.bf16.mxu0 0
    %743 = vmatpush1.bf16.msra.mxu0 %v570
    %744 = vmatprep.subr.bf16.mxu0 0
    %745 = vmatpush1.bf16.msra.mxu0 %v571
    %746 = vmatprep.subr.bf16.mxu0 0
    %747 = vmatpush1.bf16.msra.mxu0 %v572
    %748 = vmatprep.subr.bf16.mxu0 0
    %749 = vmatpush1.bf16.msra.mxu0 %v573
    %750 = vmatprep.subr.bf16.mxu0 0
    %751 = vmatpush1.bf16.msra.mxu0 %v574
    %752 = vmatprep.subr.bf16.mxu0 0
    %753 = vmatpush1.bf16.msra.mxu0 %v575
    %754 = vmatprep.mubr.bf16.mxu0 %v295
    %755 = vmatmul.mubr.bf16.gmra.mrb[0].mxu0 %v294
    %v756 = vpop.f32.mrb[0].mxu0
    %v757 = vadd.f32 %v716, %v756
    %v758 = vpop.f32.mrb[0].mxu0
    %v759 = vpop.f32.mrb[0].mxu0
    %v760 = vadd.f32 %v719, %v759
    %v761 = vpop.f32.mrb[0].mxu0
    %762 = vdwg.mxu0
    %763 = vmatprep.subr.bf16.mxu0 0
    %764 = vmatpush1.bf16.msra.mxu0 %v576
    %765 = vmatprep.subr.bf16.mxu0 0
    %766 = vmatpush1.bf16.msra.mxu0 %v577
    %767 = vmatprep.subr.bf16.mxu0 0
    %768 = vmatpush1.bf16.msra.mxu0 %v578
    %769 = vmatprep.subr.bf16.mxu0 0
    %770 = vmatpush1.bf16.msra.mxu0 %v579
    %771 = vmatprep.subr.bf16.mxu0 0
    %772 = vmatpush1.bf16.msra.mxu0 %v580
    %773 = vmatprep.subr.bf16.mxu0 0
    %774 = vmatpush1.bf16.msra.mxu0 %v581
    %775 = vmatprep.subr.bf16.mxu0 0
    %776 = vmatpush1.bf16.msra.mxu0 %v582
    %777 = vmatprep.subr.bf16.mxu0 0
    %778 = vmatpush1.bf16.msra.mxu0 %v583
    %779 = vmatprep.subr.bf16.mxu0 0
    %780 = vmatpush1.bf16.msra.mxu0 0
    %781 = vmatprep.subr.bf16.mxu0 0
    %782 = vmatpush1.bf16.msra.mxu0 0
    %783 = vmatprep.subr.bf16.mxu0 0
    %784 = vmatpush1.bf16.msra.mxu0 0
    %785 = vmatprep.subr.bf16.mxu0 0
    %786 = vmatpush1.bf16.msra.mxu0 0
    %787 = vmatprep.subr.bf16.mxu0 0
    %788 = vmatpush1.bf16.msra.mxu0 0
    %789 = vmatprep.subr.bf16.mxu0 0
    %790 = vmatpush1.bf16.msra.mxu0 0
    %791 = vmatprep.subr.bf16.mxu0 0
    %792 = vmatpush1.bf16.msra.mxu0 0
    %793 = vmatprep.subr.bf16.mxu0 0
    %794 = vmatpush1.bf16.msra.mxu0 0
    %795 = vmatprep.mubr.bf16.mxu0 0
    %796 = vmatmul.mubr.bf16.gmra.mrb[0].mxu0 %v296
    %v797 = vpop.f32.mrb[0].mxu0
    %v798 = vadd.f32 %v757, %v797
    %v799 = vpop.f32.mrb[0].mxu0
    %v800 = vpop.f32.mrb[0].mxu0
    %v801 = vadd.f32 %v760, %v800
    %v802 = vpop.f32.mrb[0].mxu0
    %803 = vdwg.mxu0
    %v804 = vsub.f32 0.0, %v798
    %v805 = vsub.f32 0.0, %v801
    %v806 = vmul.f32 %v804, 1.442695
    %v807 = vpow.pop %v806
    %v808 = vmul.f32 %v805, 1.442695
    %v809 = vpow.pop %v808
    %v810 = vadd.f32 %v807, 1.0
    %v811 = vadd.f32 %v809, 1.0
    %v812 = vrcp.pop %v810
    %v813 = vmul.f32 1.0, %v812
    %v814 = vrcp.pop %v811
    %v815 = vmul.f32 1.0, %v814
    %v816 = vpack.c.bf16 %v815, %v813
    %v817 = vld [vmem:[#allocation7] sm:$0xf]
    %v818 = vld [vmem:[#allocation7 + $0x4] sm:$0xf]
    %v819 = vld [vmem:[#allocation7 + $0x8] sm:$0xf]
    %v820 = vld [vmem:[#allocation7 + $0xc] sm:$0xf]
    %v821 = vld [vmem:[#allocation7 + $0x10] sm:$0xf]
    %v822 = vld [vmem:[#allocation7 + $0x14] sm:$0xf]
    %v823 = vld [vmem:[#allocation7 + $0x18] sm:$0xf]
    %v824 = vld [vmem:[#allocation7 + $0x1c] sm:$0xf]
    %v825 = vld [vmem:[#allocation7 + $0x20] sm:$0xf]
    %v826 = vld [vmem:[#allocation7 + $0x24] sm:$0xf]
    %v827 = vld [vmem:[#allocation7 + $0x28] sm:$0xf]
    %v828 = vld [vmem:[#allocation7 + $0x2c] sm:$0xf]
    %v829 = vld [vmem:[#allocation7 + $0x30] sm:$0xf]
    %v830 = vld [vmem:[#allocation7 + $0x34] sm:$0xf]
    %v831 = vld [vmem:[#allocation7 + $0x38] sm:$0xf]
    %v832 = vld [vmem:[#allocation7 + $0x3c] sm:$0xf]
    %v833 = vld [vmem:[%s4] sm:$0x1]
    %v835 = vlaneseq
    %v836 = vshrl.u32 %v835, 7
    %v837 = vsub.s32 0, %v836
    %v838 = vrot.slane %v833, %v837
    %v856 = vunpack.c.l.b16 %v817
    %v857 = vunpack.c.l.b16 %v818
    %v858 = vunpack.c.l.b16 %v819
    %v859 = vunpack.c.l.b16 %v820
    %v860 = vunpack.c.l.b16 %v821
    %v861 = vunpack.c.l.b16 %v822
    %v862 = vunpack.c.l.b16 %v823
    %v863 = vunpack.c.l.b16 %v824
    %v864 = vunpack.c.l.b16 %v825
    %v865 = vunpack.c.l.b16 %v826
    %v866 = vunpack.c.l.b16 %v827
    %v867 = vunpack.c.l.b16 %v828
    %v868 = vunpack.c.l.b16 %v829
    %v869 = vunpack.c.l.b16 %v830
    %v870 = vunpack.c.l.b16 %v831
    %v871 = vunpack.c.l.b16 %v832
    %v872 = vpack.c.b16 %v857, %v856
    %v873 = vpack.c.b16 %v859, %v858
    %v874 = vpack.c.b16 %v861, %v860
    %v875 = vpack.c.b16 %v863, %v862
    %v876 = vpack.c.b16 %v865, %v864
    %v877 = vpack.c.b16 %v867, %v866
    %v878 = vpack.c.b16 %v869, %v868
    %v879 = vpack.c.b16 %v871, %v870
    %888 = vmatprep.subr.bf16.mxu0 0
    %889 = vmatpush1.bf16.msra.mxu0 %v872
    %890 = vmatprep.subr.bf16.mxu0 0
    %891 = vmatpush1.bf16.msra.mxu0 %v873
    %892 = vmatprep.subr.bf16.mxu0 0
    %893 = vmatpush1.bf16.msra.mxu0 %v874
    %894 = vmatprep.subr.bf16.mxu0 0
    %895 = vmatpush1.bf16.msra.mxu0 %v875
    %896 = vmatprep.subr.bf16.mxu0 0
    %897 = vmatpush1.bf16.msra.mxu0 %v876
    %898 = vmatprep.subr.bf16.mxu0 0
    %899 = vmatpush1.bf16.msra.mxu0 %v877
    %900 = vmatprep.subr.bf16.mxu0 0
    %901 = vmatpush1.bf16.msra.mxu0 %v878
    %902 = vmatprep.subr.bf16.mxu0 0
    %903 = vmatpush1.bf16.msra.mxu0 %v879
    %904 = vmatprep.subr.bf16.mxu0 0
    %905 = vmatpush1.bf16.msra.mxu0 0
    %906 = vmatprep.subr.bf16.mxu0 0
    %907 = vmatpush1.bf16.msra.mxu0 0
    %908 = vmatprep.subr.bf16.mxu0 0
    %909 = vmatpush1.bf16.msra.mxu0 0
    %910 = vmatprep.subr.bf16.mxu0 0
    %911 = vmatpush1.bf16.msra.mxu0 0
    %912 = vmatprep.subr.bf16.mxu0 0
    %913 = vmatpush1.bf16.msra.mxu0 0
    %914 = vmatprep.subr.bf16.mxu0 0
    %915 = vmatpush1.bf16.msra.mxu0 0
    %916 = vmatprep.subr.bf16.mxu0 0
    %917 = vmatpush1.bf16.msra.mxu0 0
    %918 = vmatprep.subr.bf16.mxu0 0
    %919 = vmatpush1.bf16.msra.mxu0 0
    %920 = vmatprep.mubr.bf16.mxu0 0
    %921 = vmatmul.mubr.bf16.gmra.mrb[0].mxu0 %v816
    %v922 = vpop.f32.mrb[0].mxu0
    %v923 = vadd.f32 %v838, %v922
    %v924 = vpop.f32.mrb[0].mxu0
    %v925 = vpop.f32.mrb[0].mxu0
    %v926 = vadd.f32 %v838, %v925
    %v927 = vpop.f32.mrb[0].mxu0
    %928 = vdwg.mxu0
    %v929 = vsub.f32 0.0, %v923
    %v930 = vsub.f32 0.0, %v926
    %v931 = vmul.f32 %v929, 1.442695
    %v932 = vpow.pop %v931
    %v933 = vmul.f32 %v930, 1.442695
    %v934 = vpow.pop %v933
    %v935 = vadd.f32 %v932, 1.0
    %v936 = vadd.f32 %v934, 1.0
    %v937 = vrcp.pop %v935
    %v938 = vmul.f32 1.0, %v937
    %v939 = vrcp.pop %v936
    %v940 = vmul.f32 1.0, %v939
    %v941 = vpack.c.bf16 %v940, %v938
    %v942 = vld [vmem:[#allocation8] sm:$0xf]
    %v943 = vld [vmem:[#allocation8 + $0x4] sm:$0xf]
    %v944 = vld [vmem:[#allocation8 + $0x8] sm:$0xf]
    %v945 = vld [vmem:[#allocation8 + $0xc] sm:$0xf]
    %v946 = vld [vmem:[#allocation8 + $0x10] sm:$0xf]
    %v947 = vld [vmem:[#allocation8 + $0x14] sm:$0xf]
    %v948 = vld [vmem:[#allocation8 + $0x18] sm:$0xf]
    %v949 = vld [vmem:[#allocation8 + $0x1c] sm:$0xf]
    %v950 = vld [vmem:[#allocation8 + $0x20] sm:$0xf]
    %v951 = vld [vmem:[#allocation8 + $0x24] sm:$0xf]
    %v952 = vld [vmem:[#allocation8 + $0x28] sm:$0xf]
    %v953 = vld [vmem:[#allocation8 + $0x2c] sm:$0xf]
    %v954 = vld [vmem:[#allocation8 + $0x30] sm:$0xf]
    %v955 = vld [vmem:[#allocation8 + $0x34] sm:$0xf]
    %v956 = vld [vmem:[#allocation8 + $0x38] sm:$0xf]
    %v957 = vld [vmem:[#allocation8 + $0x3c] sm:$0xf]
    %v958 = vld [vmem:[%s6] sm:$0x1]
    %v960 = vlaneseq
    %v961 = vshrl.u32 %v960, 7
    %v962 = vsub.s32 0, %v961
    %v963 = vrot.slane %v958, %v962
    %v981 = vunpack.c.l.b16 %v942
    %v982 = vunpack.c.l.b16 %v943
    %v983 = vunpack.c.l.b16 %v944
    %v984 = vunpack.c.l.b16 %v945
    %v985 = vunpack.c.l.b16 %v946
    %v986 = vunpack.c.l.b16 %v947
    %v987 = vunpack.c.l.b16 %v948
    %v988 = vunpack.c.l.b16 %v949
    %v989 = vunpack.c.l.b16 %v950
    %v990 = vunpack.c.l.b16 %v951
    %v991 = vunpack.c.l.b16 %v952
    %v992 = vunpack.c.l.b16 %v953
    %v993 = vunpack.c.l.b16 %v954
    %v994 = vunpack.c.l.b16 %v955
    %v995 = vunpack.c.l.b16 %v956
    %v996 = vunpack.c.l.b16 %v957
    %v997 = vpack.c.b16 %v982, %v981
    %v998 = vpack.c.b16 %v984, %v983
    %v999 = vpack.c.b16 %v986, %v985
    %v1000 = vpack.c.b16 %v988, %v987
    %v1001 = vpack.c.b16 %v990, %v989
    %v1002 = vpack.c.b16 %v992, %v991
    %v1003 = vpack.c.b16 %v994, %v993
    %v1004 = vpack.c.b16 %v996, %v995
    %1013 = vmatprep.subr.bf16.mxu0 0
    %1014 = vmatpush1.bf16.msra.mxu0 %v997
    %1015 = vmatprep.subr.bf16.mxu0 0
    %1016 = vmatpush1.bf16.msra.mxu0 %v998
    %1017 = vmatprep.subr.bf16.mxu0 0
    %1018 = vmatpush1.bf16.msra.mxu0 %v999
    %1019 = vmatprep.subr.bf16.mxu0 0
    %1020 = vmatpush1.bf16.msra.mxu0 %v1000
    %1021 = vmatprep.subr.bf16.mxu0 0
    %1022 = vmatpush1.bf16.msra.mxu0 %v1001
    %1023 = vmatprep.subr.bf16.mxu0 0
    %1024 = vmatpush1.bf16.msra.mxu0 %v1002
    %1025 = vmatprep.subr.bf16.mxu0 0
    %1026 = vmatpush1.bf16.msra.mxu0 %v1003
    %1027 = vmatprep.subr.bf16.mxu0 0
    %1028 = vmatpush1.bf16.msra.mxu0 %v1004
    %1029 = vmatprep.subr.bf16.mxu0 0
    %1030 = vmatpush1.bf16.msra.mxu0 0
    %1031 = vmatprep.subr.bf16.mxu0 0
    %1032 = vmatpush1.bf16.msra.mxu0 0
    %1033 = vmatprep.subr.bf16.mxu0 0
    %1034 = vmatpush1.bf16.msra.mxu0 0
    %1035 = vmatprep.subr.bf16.mxu0 0
    %1036 = vmatpush1.bf16.msra.mxu0 0
    %1037 = vmatprep.subr.bf16.mxu0 0
    %1038 = vmatpush1.bf16.msra.mxu0 0
    %1039 = vmatprep.subr.bf16.mxu0 0
    %1040 = vmatpush1.bf16.msra.mxu0 0
    %1041 = vmatprep.subr.bf16.mxu0 0
    %1042 = vmatpush1.bf16.msra.mxu0 0
    %1043 = vmatprep.subr.bf16.mxu0 0
    %1044 = vmatpush1.bf16.msra.mxu0 0
    %1045 = vmatprep.mubr.bf16.mxu0 0
    %1046 = vmatmul.mubr.bf16.gmra.mrb[0].mxu0 %v941
    %v1047 = vpop.f32.mrb[0].mxu0
    %v1048 = vadd.f32 %v963, %v1047
    %v1049 = vpop.f32.mrb[0].mxu0
    %v1050 = vpop.f32.mrb[0].mxu0
    %v1051 = vadd.f32 %v963, %v1050
    %v1052 = vpop.f32.mrb[0].mxu0
    %1053 = vdwg.mxu0
    %v1054 = vsub.f32 0.0, %v1048
    %v1055 = vsub.f32 0.0, %v1051
    %v1056 = vmul.f32 %v1054, 1.442695
    %v1057 = vpow.pop %v1056
    %v1058 = vmul.f32 %v1055, 1.442695
    %v1059 = vpow.pop %v1058
    %v1060 = vadd.f32 %v1057, 1.0
    %v1061 = vadd.f32 %v1059, 1.0
    %v1062 = vrcp.pop %v1060
    %v1063 = vmul.f32 1.0, %v1062
    %v1064 = vrcp.pop %v1061
    %v1065 = vmul.f32 1.0, %v1064
    %v1066 = vpack.c.bf16 %v1065, %v1063
    %v1067 = vld [vmem:[#allocation10] sm:$0xf]
    %v1068 = vld [vmem:[#allocation10 + $0x4] sm:$0xf]
    %v1069 = vld [vmem:[#allocation10 + $0x8] sm:$0xf]
    %v1070 = vld [vmem:[#allocation10 + $0xc] sm:$0xf]
    %v1071 = vld [vmem:[#allocation10 + $0x10] sm:$0xf]
    %v1072 = vld [vmem:[#allocation10 + $0x14] sm:$0xf]
    %v1073 = vld [vmem:[#allocation10 + $0x18] sm:$0xf]
    %v1074 = vld [vmem:[#allocation10 + $0x1c] sm:$0xf]
    %v1075 = vld [vmem:[#allocation10 + $0x20] sm:$0xf]
    %v1076 = vld [vmem:[#allocation10 + $0x24] sm:$0xf]
    %v1077 = vld [vmem:[#allocation10 + $0x28] sm:$0xf]
    %v1078 = vld [vmem:[#allocation10 + $0x2c] sm:$0xf]
    %v1079 = vld [vmem:[#allocation10 + $0x30] sm:$0xf]
    %v1080 = vld [vmem:[#allocation10 + $0x34] sm:$0xf]
    %v1081 = vld [vmem:[#allocation10 + $0x38] sm:$0xf]
    %v1082 = vld [vmem:[#allocation10 + $0x3c] sm:$0xf]
    %v1083 = vld [vmem:[%s8] sm:$0x1]
    %v1085 = vlaneseq
    %v1086 = vshrl.u32 %v1085, 7
    %v1087 = vsub.s32 0, %v1086
    %v1088 = vrot.slane %v1083, %v1087
    %v1106 = vunpack.c.l.b16 %v1067
    %v1107 = vunpack.c.l.b16 %v1068
    %v1108 = vunpack.c.l.b16 %v1069
    %v1109 = vunpack.c.l.b16 %v1070
    %v1110 = vunpack.c.l.b16 %v1071
    %v1111 = vunpack.c.l.b16 %v1072
    %v1112 = vunpack.c.l.b16 %v1073
    %v1113 = vunpack.c.l.b16 %v1074
    %v1114 = vunpack.c.l.b16 %v1075
    %v1115 = vunpack.c.l.b16 %v1076
    %v1116 = vunpack.c.l.b16 %v1077
    %v1117 = vunpack.c.l.b16 %v1078
    %v1118 = vunpack.c.l.b16 %v1079
    %v1119 = vunpack.c.l.b16 %v1080
    %v1120 = vunpack.c.l.b16 %v1081
    %v1121 = vunpack.c.l.b16 %v1082
    %v1122 = vpack.c.b16 %v1107, %v1106
    %v1123 = vpack.c.b16 %v1109, %v1108
    %v1124 = vpack.c.b16 %v1111, %v1110
    %v1125 = vpack.c.b16 %v1113, %v1112
    %v1126 = vpack.c.b16 %v1115, %v1114
    %v1127 = vpack.c.b16 %v1117, %v1116
    %v1128 = vpack.c.b16 %v1119, %v1118
    %v1129 = vpack.c.b16 %v1121, %v1120
    %1138 = vmatprep.subr.bf16.mxu0 0
    %1139 = vmatpush1.bf16.msra.mxu0 %v1122
    %1140 = vmatprep.subr.bf16.mxu0 0
    %1141 = vmatpush1.bf16.msra.mxu0 %v1123
    %1142 = vmatprep.subr.bf16.mxu0 0
    %1143 = vmatpush1.bf16.msra.mxu0 %v1124
    %1144 = vmatprep.subr.bf16.mxu0 0
    %1145 = vmatpush1.bf16.msra.mxu0 %v1125
    %1146 = vmatprep.subr.bf16.mxu0 0
    %1147 = vmatpush1.bf16.msra.mxu0 %v1126
    %1148 = vmatprep.subr.bf16.mxu0 0
    %1149 = vmatpush1.bf16.msra.mxu0 %v1127
    %1150 = vmatprep.subr.bf16.mxu0 0
    %1151 = vmatpush1.bf16.msra.mxu0 %v1128
    %1152 = vmatprep.subr.bf16.mxu0 0
    %1153 = vmatpush1.bf16.msra.mxu0 %v1129
    %1154 = vmatprep.subr.bf16.mxu0 0
    %1155 = vmatpush1.bf16.msra.mxu0 0
    %1156 = vmatprep.subr.bf16.mxu0 0
    %1157 = vmatpush1.bf16.msra.mxu0 0
    %1158 = vmatprep.subr.bf16.mxu0 0
    %1159 = vmatpush1.bf16.msra.mxu0 0
    %1160 = vmatprep.subr.bf16.mxu0 0
    %1161 = vmatpush1.bf16.msra.mxu0 0
    %1162 = vmatprep.subr.bf16.mxu0 0
    %1163 = vmatpush1.bf16.msra.mxu0 0
    %1164 = vmatprep.subr.bf16.mxu0 0
    %1165 = vmatpush1.bf16.msra.mxu0 0
    %1166 = vmatprep.subr.bf16.mxu0 0
    %1167 = vmatpush1.bf16.msra.mxu0 0
    %1168 = vmatprep.subr.bf16.mxu0 0
    %1169 = vmatpush1.bf16.msra.mxu0 0
    %1170 = vmatprep.mubr.bf16.mxu0 0
    %1171 = vmatmul.mubr.bf16.gmra.mrb[0].mxu0 %v1066
    %v1172 = vpop.f32.mrb[0].mxu0
    %v1173 = vadd.f32 %v1088, %v1172
    %v1174 = vpop.f32.mrb[0].mxu0
    %v1175 = vpop.f32.mrb[0].mxu0
    %v1176 = vadd.f32 %v1088, %v1175
    %v1177 = vpop.f32.mrb[0].mxu0
    %1178 = vdwg.mxu0
    %v1179 = vsub.f32 0.0, %v1173
    %v1180 = vsub.f32 0.0, %v1176
    %v1181 = vmul.f32 %v1179, 1.442695
    %v1182 = vpow.pop %v1181
    %v1183 = vmul.f32 %v1180, 1.442695
    %v1184 = vpow.pop %v1183
    %v1185 = vadd.f32 %v1182, 1.0
    %v1186 = vadd.f32 %v1184, 1.0
    %v1187 = vrcp.pop %v1185
    %v1188 = vmul.f32 1.0, %v1187
    %v1189 = vrcp.pop %v1186
    %v1190 = vmul.f32 1.0, %v1189
    %v1191 = vpack.c.bf16 %v1190, %v1188
    %v1192 = vld [vmem:[#allocation11] sm:$0xf]
    %v1193 = vld [vmem:[#allocation11 + $0x4] sm:$0xf]
    %v1194 = vld [vmem:[#allocation11 + $0x8] sm:$0xf]
    %v1195 = vld [vmem:[#allocation11 + $0xc] sm:$0xf]
    %v1196 = vld [vmem:[#allocation11 + $0x10] sm:$0xf]
    %v1197 = vld [vmem:[#allocation11 + $0x14] sm:$0xf]
    %v1198 = vld [vmem:[#allocation11 + $0x18] sm:$0xf]
    %v1199 = vld [vmem:[#allocation11 + $0x1c] sm:$0xf]
    %v1200 = vld [vmem:[#allocation11 + $0x20] sm:$0xf]
    %v1201 = vld [vmem:[#allocation11 + $0x24] sm:$0xf]
    %v1202 = vld [vmem:[#allocation11 + $0x28] sm:$0xf]
    %v1203 = vld [vmem:[#allocation11 + $0x2c] sm:$0xf]
    %v1204 = vld [vmem:[#allocation11 + $0x30] sm:$0xf]
    %v1205 = vld [vmem:[#allocation11 + $0x34] sm:$0xf]
    %v1206 = vld [vmem:[#allocation11 + $0x38] sm:$0xf]
    %v1207 = vld [vmem:[#allocation11 + $0x3c] sm:$0xf]
    %v1208 = vld [vmem:[%s10] sm:$0x1]
    %v1210 = vlaneseq
    %v1211 = vshrl.u32 %v1210, 7
    %v1212 = vsub.s32 0, %v1211
    %v1213 = vrot.slane %v1208, %v1212
    %v1231 = vunpack.c.l.b16 %v1192
    %v1232 = vunpack.c.l.b16 %v1193
    %v1233 = vunpack.c.l.b16 %v1194
    %v1234 = vunpack.c.l.b16 %v1195
    %v1235 = vunpack.c.l.b16 %v1196
    %v1236 = vunpack.c.l.b16 %v1197
    %v1237 = vunpack.c.l.b16 %v1198
    %v1238 = vunpack.c.l.b16 %v1199
    %v1239 = vunpack.c.l.b16 %v1200
    %v1240 = vunpack.c.l.b16 %v1201
    %v1241 = vunpack.c.l.b16 %v1202
    %v1242 = vunpack.c.l.b16 %v1203
    %v1243 = vunpack.c.l.b16 %v1204
    %v1244 = vunpack.c.l.b16 %v1205
    %v1245 = vunpack.c.l.b16 %v1206
    %v1246 = vunpack.c.l.b16 %v1207
    %v1247 = vpack.c.b16 %v1232, %v1231
    %v1248 = vpack.c.b16 %v1234, %v1233
    %v1249 = vpack.c.b16 %v1236, %v1235
    %v1250 = vpack.c.b16 %v1238, %v1237
    %v1251 = vpack.c.b16 %v1240, %v1239
    %v1252 = vpack.c.b16 %v1242, %v1241
    %v1253 = vpack.c.b16 %v1244, %v1243
    %v1254 = vpack.c.b16 %v1246, %v1245
    %1263 = vmatprep.subr.bf16.mxu0 0
    %1264 = vmatpush1.bf16.msra.mxu0 %v1247
    %1265 = vmatprep.subr.bf16.mxu0 0
    %1266 = vmatpush1.bf16.msra.mxu0 %v1248
    %1267 = vmatprep.subr.bf16.mxu0 0
    %1268 = vmatpush1.bf16.msra.mxu0 %v1249
    %1269 = vmatprep.subr.bf16.mxu0 0
    %1270 = vmatpush1.bf16.msra.mxu0 %v1250
    %1271 = vmatprep.subr.bf16.mxu0 0
    %1272 = vmatpush1.bf16.msra.mxu0 %v1251
    %1273 = vmatprep.subr.bf16.mxu0 0
    %1274 = vmatpush1.bf16.msra.mxu0 %v1252
    %1275 = vmatprep.subr.bf16.mxu0 0
    %1276 = vmatpush1.bf16.msra.mxu0 %v1253
    %1277 = vmatprep.subr.bf16.mxu0 0
    %1278 = vmatpush1.bf16.msra.mxu0 %v1254
    %1279 = vmatprep.subr.bf16.mxu0 0
    %1280 = vmatpush1.bf16.msra.mxu0 0
    %1281 = vmatprep.subr.bf16.mxu0 0
    %1282 = vmatpush1.bf16.msra.mxu0 0
    %1283 = vmatprep.subr.bf16.mxu0 0
    %1284 = vmatpush1.bf16.msra.mxu0 0
    %1285 = vmatprep.subr.bf16.mxu0 0
    %1286 = vmatpush1.bf16.msra.mxu0 0
    %1287 = vmatprep.subr.bf16.mxu0 0
    %1288 = vmatpush1.bf16.msra.mxu0 0
    %1289 = vmatprep.subr.bf16.mxu0 0
    %1290 = vmatpush1.bf16.msra.mxu0 0
    %1291 = vmatprep.subr.bf16.mxu0 0
    %1292 = vmatpush1.bf16.msra.mxu0 0
    %1293 = vmatprep.subr.bf16.mxu0 0
    %1294 = vmatpush1.bf16.msra.mxu0 0
    %1295 = vmatprep.mubr.bf16.mxu0 0
    %1296 = vmatmul.mubr.bf16.gmra.mrb[0].mxu0 %v1191
    %v1297 = vpop.f32.mrb[0].mxu0
    %v1298 = vadd.f32 %v1213, %v1297
    %v1299 = vpop.f32.mrb[0].mxu0
    %v1300 = vpop.f32.mrb[0].mxu0
    %v1301 = vadd.f32 %v1213, %v1300
    %v1302 = vpop.f32.mrb[0].mxu0
    %1303 = vdwg.mxu0
    %v1304 = vsub.f32 0.0, %v1298
    %v1305 = vsub.f32 0.0, %v1301
    %v1306 = vmul.f32 %v1304, 1.442695
    %v1307 = vpow.pop %v1306
    %v1308 = vmul.f32 %v1305, 1.442695
    %v1309 = vpow.pop %v1308
    %v1310 = vadd.f32 %v1307, 1.0
    %v1311 = vadd.f32 %v1309, 1.0
    %v1312 = vrcp.pop %v1310
    %v1313 = vmul.f32 1.0, %v1312
    %v1314 = vrcp.pop %v1311
    %v1315 = vmul.f32 1.0, %v1314
    %v1316 = vpack.c.bf16 %v1315, %v1313
    %v1317 = vld [vmem:[#allocation13] sm:$0xf]
    %v1318 = vld [vmem:[#allocation13 + $0x4] sm:$0xf]
    %v1319 = vld [vmem:[#allocation13 + $0x8] sm:$0xf]
    %v1320 = vld [vmem:[#allocation13 + $0xc] sm:$0xf]
    %v1321 = vld [vmem:[#allocation13 + $0x10] sm:$0xf]
    %v1322 = vld [vmem:[#allocation13 + $0x14] sm:$0xf]
    %v1323 = vld [vmem:[#allocation13 + $0x18] sm:$0xf]
    %v1324 = vld [vmem:[#allocation13 + $0x1c] sm:$0xf]
    %v1325 = vld [vmem:[#allocation13 + $0x20] sm:$0xf]
    %v1326 = vld [vmem:[#allocation13 + $0x24] sm:$0xf]
    %v1327 = vld [vmem:[#allocation13 + $0x28] sm:$0xf]
    %v1328 = vld [vmem:[#allocation13 + $0x2c] sm:$0xf]
    %v1329 = vld [vmem:[#allocation13 + $0x30] sm:$0xf]
    %v1330 = vld [vmem:[#allocation13 + $0x34] sm:$0xf]
    %v1331 = vld [vmem:[#allocation13 + $0x38] sm:$0xf]
    %v1332 = vld [vmem:[#allocation13 + $0x3c] sm:$0xf]
    %v1333 = vld [vmem:[%s12] sm:$0x1]
    %v1335 = vlaneseq
    %v1336 = vshrl.u32 %v1335, 7
    %v1337 = vsub.s32 0, %v1336
    %v1338 = vrot.slane %v1333, %v1337
    %v1356 = vunpack.c.l.b16 %v1317
    %v1357 = vunpack.c.l.b16 %v1318
    %v1358 = vunpack.c.l.b16 %v1319
    %v1359 = vunpack.c.l.b16 %v1320
    %v1360 = vunpack.c.l.b16 %v1321
    %v1361 = vunpack.c.l.b16 %v1322
    %v1362 = vunpack.c.l.b16 %v1323
    %v1363 = vunpack.c.l.b16 %v1324
    %v1364 = vunpack.c.l.b16 %v1325
    %v1365 = vunpack.c.l.b16 %v1326
    %v1366 = vunpack.c.l.b16 %v1327
    %v1367 = vunpack.c.l.b16 %v1328
    %v1368 = vunpack.c.l.b16 %v1329
    %v1369 = vunpack.c.l.b16 %v1330
    %v1370 = vunpack.c.l.b16 %v1331
    %v1371 = vunpack.c.l.b16 %v1332
    %v1372 = vpack.c.b16 %v1357, %v1356
    %v1373 = vpack.c.b16 %v1359, %v1358
    %v1374 = vpack.c.b16 %v1361, %v1360
    %v1375 = vpack.c.b16 %v1363, %v1362
    %v1376 = vpack.c.b16 %v1365, %v1364
    %v1377 = vpack.c.b16 %v1367, %v1366
    %v1378 = vpack.c.b16 %v1369, %v1368
    %v1379 = vpack.c.b16 %v1371, %v1370
    %1388 = vmatprep.subr.bf16.mxu0 0
    %1389 = vmatpush1.bf16.msra.mxu0 %v1372
    %1390 = vmatprep.subr.bf16.mxu0 0
    %1391 = vmatpush1.bf16.msra.mxu0 %v1373
    %1392 = vmatprep.subr.bf16.mxu0 0
    %1393 = vmatpush1.bf16.msra.mxu0 %v1374
    %1394 = vmatprep.subr.bf16.mxu0 0
    %1395 = vmatpush1.bf16.msra.mxu0 %v1375
    %1396 = vmatprep.subr.bf16.mxu0 0
    %1397 = vmatpush1.bf16.msra.mxu0 %v1376
    %1398 = vmatprep.subr.bf16.mxu0 0
    %1399 = vmatpush1.bf16.msra.mxu0 %v1377
    %1400 = vmatprep.subr.bf16.mxu0 0
    %1401 = vmatpush1.bf16.msra.mxu0 %v1378
    %1402 = vmatprep.subr.bf16.mxu0 0
    %1403 = vmatpush1.bf16.msra.mxu0 %v1379
    %1404 = vmatprep.subr.bf16.mxu0 0
    %1405 = vmatpush1.bf16.msra.mxu0 0
    %1406 = vmatprep.subr.bf16.mxu0 0
    %1407 = vmatpush1.bf16.msra.mxu0 0
    %1408 = vmatprep.subr.bf16.mxu0 0
    %1409 = vmatpush1.bf16.msra.mxu0 0
    %1410 = vmatprep.subr.bf16.mxu0 0
    %1411 = vmatpush1.bf16.msra.mxu0 0
    %1412 = vmatprep.subr.bf16.mxu0 0
    %1413 = vmatpush1.bf16.msra.mxu0 0
    %1414 = vmatprep.subr.bf16.mxu0 0
    %1415 = vmatpush1.bf16.msra.mxu0 0
    %1416 = vmatprep.subr.bf16.mxu0 0
    %1417 = vmatpush1.bf16.msra.mxu0 0
    %1418 = vmatprep.subr.bf16.mxu0 0
    %1419 = vmatpush1.bf16.msra.mxu0 0
    %1420 = vmatprep.mubr.bf16.mxu0 0
    %1421 = vmatmul.mubr.bf16.gmra.mrb[0].mxu0 %v1316
    %v1422 = vpop.f32.mrb[0].mxu0
    %v1423 = vadd.f32 %v1338, %v1422
    %v1424 = vpop.f32.mrb[0].mxu0
    %v1425 = vpop.f32.mrb[0].mxu0
    %v1426 = vadd.f32 %v1338, %v1425
    %v1427 = vpop.f32.mrb[0].mxu0
    %1428 = vdwg.mxu0
    %v1429 = vlaneseq
    %v1430 = vand.u32 %v1429, 127
    %vm1431 = vcmp.lt.s32.totalorder %v1430, 10
    %v1432 = vsel %vm1431, %v1423, -1e+30
    %v1433 = vsel %vm1431, %v1426, -1e+30
    %1434 = vmax.xlane.f32.xlu0 %v1432
    %v1435 = vpop.xlane.xlu0 %1434
    %1436 = vmax.xlane.f32.xlu0 %v1433
    %v1437 = vpop.xlane.xlu0 %1436
    %v1438 = vsub.f32 %v1432, %v1435
    %v1439 = vsub.f32 %v1433, %v1437
    %v1440 = vmul.f32 %v1438, 1.442695
    %v1441 = vpow.pop %v1440
    %v1442 = vmul.f32 %v1439, 1.442695
    %v1443 = vpow.pop %v1442
    %1444 = vadd.xlane.f32.xlu0 %v1441
    %v1445 = vpop.xlane.xlu0 %1444
    %1446 = vadd.xlane.f32.xlu0 %v1443
    %v1447 = vpop.xlane.xlu0 %1446
    %v1448 = vlog2.pop %v1445
    %v1449 = vmul.f32 %v1448, 0.6931472
    %v1450 = vlog2.pop %v1447
    %v1451 = vmul.f32 %v1450, 0.6931472
    %v1452 = vsub.f32 %v1438, %v1449
    %v1453 = vsub.f32 %v1439, %v1451
    %1454 = vst [vmem:[#allocation14] sm:$0xff] %v1452
    %1455 = vst [vmem:[#allocation14 + $0x8] sm:$0xff] %v1453
    // Predicated region
    $region82: #{tpu_custom_call.1} parent=1 // pred_check
      _
    $region83: #{tpu_custom_call.1} parent=1 // pred_check_branch
      %1457 = sbr.rel (0) target = $region85
    $region84: #{tpu_custom_call.1} parent=1 // pred_region
      %s1459 = ssub.s32 256, 256
      %1460 = vsyncadd [#allocation4], %s1459
      %s1461 = sshll.u32 [#allocation14], 4
      %s1462 = int_to_ptr.vmem [resolvable:$true] %s1461
      %1467 = dma.vmem_to_hbm [thread:$0]  %s1462, 256, %s13, [#allocation4], 128, 128, 8
    $region85: #{tpu_custom_call.1} parent=1 // pred_fallthru
      _
    // Predicated region
    $region86: #{tpu_custom_call.1} parent=1 // pred_check
      _
    $region87: #{tpu_custom_call.1} parent=1 // pred_check_branch
      %1469 = sbr.rel (0) target = $region89
    $region88: #{tpu_custom_call.1} parent=1 // pred_region
      %1470 = dma.done [#allocation4], 256
    $region89: #{tpu_custom_call.1} parent=1 // pred_fallthru
      _
    %1471 = vsyncpa [#allocation3], 1
    %1472 = vsyncpa [#allocation6], 1
    %1473 = vsyncpa [#allocation9], 1
    %1474 = vsyncpa [#allocation12], 1
    %1475 = vsyncpa [#allocation4], 1

</llo_original>
